<compile_context>
chip_gen: v7x
topology: tpu7x:2x2x1
jax: 0.10.0
libtpu: 0.0.40
codegen_flags: <defaults>
</compile_context>

<pallas_src>
import numpy as np
import jax
import jax.numpy as jnp
from jax.experimental import pallas as pl
from jax.experimental.pallas import tpu as pltpu


MODEL_CFG = dict(
    LAYER_NUMS=[1, 1],
    LAYER_STRIDES=[1, 2],
    NUM_FILTERS=[8, 16],
    UPSAMPLE_STRIDES=[1, 2],
    NUM_UPSAMPLE_FILTERS=[16, 16],
    TILE_COUNT=4,          # sbnet tiling parameter; unused in the dense path
)
BN_EPS = 1e-3


# ----------------------------------------------------------------------------
# Deterministic parameter construction (mirrors __init__ of the module)
# ----------------------------------------------------------------------------
def _bn_fold(key, c):
    k1, k2, k3, k4 = jax.random.split(key, 4)
    gamma = 1.0 + 0.1 * jax.random.normal(k1, (c,), jnp.float32)
    beta = 0.1 * jax.random.normal(k2, (c,), jnp.float32)
    mean = 0.1 * jax.random.normal(k3, (c,), jnp.float32)
    var = 1.0 + 0.1 * jax.random.uniform(k4, (c,), jnp.float32)
    scale = gamma / jnp.sqrt(var + BN_EPS)
    bias = beta - mean * scale
    return scale, bias


def _conv_w(key, kh, kw, cin, cout):
    fan_in = kh * kw * cin
    return (jax.random.normal(key, (kh, kw, cin, cout), jnp.float32)
            * (2.0 / fan_in) ** 0.5)


def init_params(key, cfg, input_channels):
    layer_nums = cfg["LAYER_NUMS"]
    layer_strides = cfg["LAYER_STRIDES"]
    num_filters = cfg["NUM_FILTERS"]
    upsample_strides = cfg["UPSAMPLE_STRIDES"]
    num_up_filters = cfg["NUM_UPSAMPLE_FILTERS"]
    num_levels = len(layer_nums)
    c_in_list = [input_channels, *num_filters[:-1]]

    blocks, deblocks = [], []
    for idx in range(num_levels):
        cur = []
        cins = [c_in_list[idx]] + [num_filters[idx]] * layer_nums[idx]
        strides = [layer_strides[idx]] + [1] * layer_nums[idx]
        for cin, st in zip(cins, strides):
            key, kw_, kb_ = jax.random.split(key, 3)
            w = _conv_w(kw_, 3, 3, cin, num_filters[idx])
            scale, bias = _bn_fold(kb_, num_filters[idx])
            cur.append((w, scale, bias, st))
        blocks.append(cur)

        if len(upsample_strides) > 0:
            us = upsample_strides[idx]
            key, kw_, kb_ = jax.random.split(key, 3)
            if us >= 1:
                w = _conv_w(kw_, us, us, num_filters[idx], num_up_filters[idx])
                scale, bias = _bn_fold(kb_, num_up_filters[idx])
                deblocks.append(("deconv", w, scale, bias, us))
            else:
                st = int(round(1.0 / us))
                w = _conv_w(kw_, st, st, num_filters[idx], num_up_filters[idx])
                scale, bias = _bn_fold(kb_, num_up_filters[idx])
                deblocks.append(("conv_s", w, scale, bias, st))

    c_in = sum(num_up_filters)
    if len(upsample_strides) > num_levels:
        us = upsample_strides[-1]
        key, kw_, kb_ = jax.random.split(key, 3)
        w = _conv_w(kw_, us, us, c_in, c_in)
        scale, bias = _bn_fold(kb_, c_in)
        deblocks.append(("deconv", w, scale, bias, us))

    return dict(blocks=blocks, deblocks=deblocks)


# ----------------------------------------------------------------------------
# Host-side operator preprocessing: BN fold + banded-matrix construction
# ----------------------------------------------------------------------------
def _fold(w, scale):
    return (np.asarray(w, np.float32)
            * np.asarray(scale, np.float32).reshape(1, 1, 1, -1))


def _pad_cin(w_f, cin_pad):
    k1, k2, cin, cout = w_f.shape
    if cin_pad == cin:
        return w_f
    out = np.zeros((k1, k2, cin_pad, cout), np.float32)
    out[:, :, :cin, :] = w_f
    return out


def _build_conv_T(w_f, Win, stride, pad):
    """Band-stacked weight: (k*Win*Cin, Wout*Cout); column pad/stride folded in."""
    k = w_f.shape[0]
    Cin, Cout = w_f.shape[2], w_f.shape[3]
    Wout = (Win + 2 * pad - k) // stride + 1
    T = np.zeros((k, Win * Cin, Wout * Cout), np.float32)
    for dy in range(k):
        for dx in range(k):
            for wo in range(Wout):
                wi = stride * wo + dx - pad
                if 0 <= wi < Win:
                    T[dy, wi * Cin:(wi + 1) * Cin,
                      wo * Cout:(wo + 1) * Cout] = w_f[dy, dx]
    return T.reshape(k * Win * Cin, Wout * Cout), Wout


def _build_row_select(N, Hin, k, stride, pad):
    """Block-diagonal 0/1 row picker (k*N*Ho, N*Hin); rows ordered [dy][n][ho]."""
    Ho = (Hin + 2 * pad - k) // stride + 1
    S = np.zeros((k * N * Ho, N * Hin), np.float32)
    for dy in range(k):
        for n in range(N):
            for i in range(Ho):
                r = stride * i + dy - pad
                if 0 <= r < Hin:
                    S[dy * N * Ho + n * Ho + i, n * Hin + r] = 1.0
    return S, Ho


def _build_deconv_T(w_f, Win):
    """ConvTranspose (kernel==stride==u, pad=0): (Win*Cin, u*u*Win*Cout)."""
    u = w_f.shape[0]
    Cin, Cout = w_f.shape[2], w_f.shape[3]
    T = np.zeros((Win * Cin, u * u * Win * Cout), np.float32)
    for p in range(u):
        for q in range(u):
            for wi in range(Win):
                c0 = p * (u * Win * Cout) + (u * wi + q) * Cout
                T[wi * Cin:(wi + 1) * Cin, c0:c0 + Cout] = w_f[p, q]
    return T


def _build_plan(params, N, H, W, input_channels):
    ops, levels, scratches = [], [], []
    flops = 0

    # Pad the network-input channels so the first conv's row slabs are a
    # 128-lane multiple (aligned lane concatenation inside the kernel).
    cin_pad = input_channels
    while (W * cin_pad) % 128 != 0 and cin_pad < input_channels + 128:
        cin_pad += 1

    h, w, c = H, W, cin_pad
    have_deblocks = len(params["deblocks"]) > 0
    first_conv = True
    for li, blk in enumerate(params["blocks"]):
        convs = []
        for (wgt, scale, bias, stride) in blk:
            wf = _fold(wgt, scale)
            if first_conv:
                wf = _pad_cin(wf, cin_pad)
            first_conv = False
            k = wf.shape[0]
            pad = k // 2
            cin, cout = wf.shape[2], wf.shape[3]
            T, Wout = _build_conv_T(wf, w, stride, pad)
            Ho = (h + 2 * pad - k) // stride + 1
            brow = np.tile(np.asarray(bias, np.float32),
                           Wout).reshape(1, Wout * cout)
            idx = len(ops)
            ops += [jnp.asarray(T, jnp.bfloat16), jnp.asarray(brow, jnp.float32)]
            cd = dict(t=idx, b=idx + 1, k=k, pad=pad, Ho=Ho)
            if stride == 1 and Ho == h:
                # padded-row scratch path (no selection matmul)
                cd["scr"] = len(scratches)
                scratches.append(pltpu.VMEM((N, h + 2 * pad, w * cin),
                                            jnp.float32))
            else:
                # strided row gather via a block-diagonal 0/1 matmul
                S, Ho2 = _build_row_select(N, h, k, stride, pad)
                assert Ho2 == Ho
                cd["s"] = len(ops)
                ops.append(jnp.asarray(S, jnp.bfloat16))
                flops += 2 * (k * N * Ho) * (N * h) * (w * cin)
            convs.append(cd)
            flops += 2 * (N * Ho) * (k * w * cin) * (Wout * cout)
            h, w, c = Ho, Wout, cout

        deblock, up_info = None, ("plain", h, w, c)
        out_rows, out_cols = h, w * c
        if have_deblocks:
            kind, wgt, scale, bias, st = params["deblocks"][li]
            wf = _fold(wgt, scale)
            cout = wf.shape[3]
            if kind == "deconv":
                u = st
                T = _build_deconv_T(wf, w)
                brow = np.tile(np.asarray(bias, np.float32),
                               u * u * w).reshape(1, u * u * w * cout)
                idx = len(ops)
                ops += [jnp.asarray(T, jnp.bfloat16),
                        jnp.asarray(brow, jnp.float32)]
                deblock = dict(kind="deconv", t=idx, b=idx + 1)
                up_info = ("deconv", h, w, cout, u)
                out_rows, out_cols = h, u * u * w * cout
                flops += 2 * (N * h) * (w * c) * (u * u * w * cout)
            else:  # stride-k conv downsample (UPSAMPLE_STRIDES < 1)
                kk = st
                T, Wout = _build_conv_T(wf, w, kk, 0)
                S, Ho = _build_row_select(N, h, kk, kk, 0)
                brow = np.tile(np.asarray(bias, np.float32),
                               Wout).reshape(1, Wout * cout)
                idx = len(ops)
                ops += [jnp.asarray(T, jnp.bfloat16),
                        jnp.asarray(brow, jnp.float32),
                        jnp.asarray(S, jnp.bfloat16)]
                deblock = dict(kind="conv", t=idx, b=idx + 1, s=idx + 2,
                               k=kk, Ho=Ho)
                up_info = ("plain", Ho, Wout, cout)
                out_rows, out_cols = Ho, Wout * cout
                flops += (2 * (kk * N * Ho) * (N * h) * (w * c)
                          + 2 * (N * Ho) * (kk * w * c) * (Wout * cout))
        levels.append(dict(convs=convs, deblock=deblock, up_info=up_info,
                           out_rows=out_rows, out_cols=out_cols))
        # next level consumes this level's *block* output (pre-deblock): (h,w,c)
    return ops, levels, scratches, cin_pad, flops


# ----------------------------------------------------------------------------
# In-kernel building blocks (traced once; everything stays in VMEM/vregs)
# ----------------------------------------------------------------------------
def _apply_same_conv(a, t_ref, b_ref, scr, k, pad, Ho):
    """Stride-1 'same' conv: padded-row scratch + k slabs + ONE fused matmul."""
    N_, Hin, Wc = a.shape
    scr[...] = jnp.zeros(scr.shape, jnp.float32)
    scr[:, pad:pad + Hin, :] = a
    slabs = [scr[:, dy:dy + Ho, :] for dy in range(k)]
    lhs = jnp.concatenate(slabs, axis=-1).reshape(N_ * Ho, k * Wc)
    y = jnp.dot(lhs.astype(jnp.bfloat16), t_ref[...],
                preferred_element_type=jnp.float32)
    y = jnp.maximum(y + b_ref[...], 0.0)
    return y.reshape(N_, Ho, t_ref.shape[1])


def _apply_strided_conv(a, s_ref, t_ref, b_ref, k, Ho):
    """Row-strided conv: 0/1 block-diag row pick (exact) + ONE fused matmul."""
    N_, Hin, Wc = a.shape
    flat = a.reshape(N_ * Hin, Wc).astype(jnp.bfloat16)
    sel = jnp.dot(s_ref[...], flat, preferred_element_type=jnp.float32)
    sel = sel.astype(jnp.bfloat16)                 # exact: S is a 0/1 row pick
    NHo = N_ * Ho
    slabs = [sel[dy * NHo:(dy + 1) * NHo, :] for dy in range(k)]
    lhs = jnp.concatenate(slabs, axis=-1)          # (N*Ho, k*Wc), 128-aligned
    y = jnp.dot(lhs, t_ref[...], preferred_element_type=jnp.float32)
    y = jnp.maximum(y + b_ref[...], 0.0)
    return y.reshape(N_, Ho, t_ref.shape[1])


def _apply_deconv(a, t_ref, b_ref):
    """ConvTranspose with kernel==stride: a single per-row matmul; the pixel
    shuffle is a free reshape outside the kernel."""
    N_, Hin, Wc = a.shape
    lhs = a.reshape(N_ * Hin, Wc).astype(jnp.bfloat16)
    y = jnp.dot(lhs, t_ref[...], preferred_element_type=jnp.float32)
    y = jnp.maximum(y + b_ref[...], 0.0)
    return y.reshape(N_, Hin, t_ref.shape[1])


def _make_backbone_kernel(levels, n_ops, n_outs):
    def kernel(*refs):
        x_ref = refs[0]
        prefs = refs[1:1 + n_ops]
        orefs = refs[1 + n_ops:1 + n_ops + n_outs]
        srefs = refs[1 + n_ops + n_outs:]
        a = x_ref[...]                              # (N, H, W*Cin_pad) f32
        for li, lvl in enumerate(levels):
            for cd in lvl["convs"]:
                if "scr" in cd:
                    a = _apply_same_conv(a, prefs[cd["t"]], prefs[cd["b"]],
                                         srefs[cd["scr"]], cd["k"], cd["pad"],
                                         cd["Ho"])
                else:
                    a = _apply_strided_conv(a, prefs[cd["s"]], prefs[cd["t"]],
                                            prefs[cd["b"]], cd["k"], cd["Ho"])
            db = lvl["deblock"]
            if db is None:
                up = a
            elif db["kind"] == "deconv":
                up = _apply_deconv(a, prefs[db["t"]], prefs[db["b"]])
            else:
                up = _apply_strided_conv(a, prefs[db["s"]], prefs[db["t"]],
                                         prefs[db["b"]], db["k"], db["Ho"])
            orefs[li][...] = up                      # lane-dense f32 store
    return kernel


def _rowmatmul_bias_relu_kernel(x_ref, t_ref, b_ref, o_ref):
    # used only for the optional final deblock (not in the default config)
    n, hc, kdim = x_ref.shape
    lhs = x_ref[...].reshape(n * hc, kdim).astype(jnp.bfloat16)
    y = jnp.dot(lhs, t_ref[...], preferred_element_type=jnp.float32)
    y = jnp.maximum(y + b_ref[...], 0.0)
    o_ref[...] = y.reshape(n, hc, t_ref.shape[1])


# ----------------------------------------------------------------------------
# Forward builder (mirrors BaseBEVBackboneSbnet.forward, NHWC layout)
# ----------------------------------------------------------------------------
def build_forward(params, N, H, W, input_channels):
    ops, levels, scratches, cin_pad, flops = _build_plan(
        params, N, H, W, input_channels)
    n_ops, n_outs = len(ops), len(levels)
    kernel = _make_backbone_kernel(levels, n_ops, n_outs)

    out_shape = tuple(jax.ShapeDtypeStruct((N, l["out_rows"], l["out_cols"]),
                                           jnp.float32) for l in levels)
    bytes_accessed = (N * H * W * cin_pad * 4
                      + sum(int(a.size) * a.dtype.itemsize for a in ops)
                      + sum(N * l["out_rows"] * l["out_cols"] * 4
                            for l in levels))

    backbone_call = pl.pallas_call(
        kernel,
        out_shape=out_shape,
        scratch_shapes=scratches,
        cost_estimate=pl.CostEstimate(flops=int(flops), transcendentals=0,
                                      bytes_accessed=int(bytes_accessed)),
    )

    # Optional extra deblock on the channel concat (not in the default config).
    extra = None
    if len(params["deblocks"]) > len(params["blocks"]):
        _, wgt, scale, bias, st = params["deblocks"][-1]
        up0 = levels[0]["up_info"]
        Hc, Wc = (up0[1] * up0[4], up0[2] * up0[4]) if up0[0] == "deconv" \
            else (up0[1], up0[2])
        Cc = sum(l["up_info"][3] for l in levels)
        wf = _fold(wgt, scale)
        u, co = st, wf.shape[3]
        Tx = jnp.asarray(_build_deconv_T(wf, Wc), jnp.bfloat16)
        bx = jnp.asarray(np.tile(np.asarray(bias, np.float32),
                                 u * u * Wc).reshape(1, u * u * Wc * co),
                         jnp.float32)
        extra = (Tx, bx, u, co, Hc, Wc, Cc)

    def forward(spatial_features_nhwc):
        x = spatial_features_nhwc
        if cin_pad != input_channels:
            x = jnp.pad(x, ((0, 0), (0, 0), (0, 0),
                            (0, cin_pad - input_channels)))
        x_rows = x.reshape(N, H, W * cin_pad)
        outs = backbone_call(x_rows, *ops)
        if not isinstance(outs, (tuple, list)):
            outs = (outs,)
        ups = []
        for lvl, y in zip(levels, outs):
            info = lvl["up_info"]
            if info[0] == "deconv":
                _, hin, win, cch, u = info
                ups.append(y.reshape(N, hin * u, win * u, cch))  # free reshape
            else:
                _, hr, wr, cch = info
                ups.append(y.reshape(N, hr, wr, cch))
        out = jnp.concatenate(ups, axis=-1) if len(ups) > 1 else ups[0]
        if extra is not None:
            Tx, bx, u, co, Hc, Wc, Cc = extra
            xr = out.reshape(N, Hc, Wc * Cc)
            y = pl.pallas_call(
                _rowmatmul_bias_relu_kernel,
                out_shape=jax.ShapeDtypeStruct((N, Hc, u * u * Wc * co),
                                               jnp.float32),
            )(xr, Tx, bx)
            out = y.reshape(N, Hc * u, Wc * u, co)
        return out                                   # spatial_features_2d NHWC

    return forward


# ----------------------------------------------------------------------------
# Pure-JAX f32 reference (same math, NHWC) for a correctness sanity check
# ----------------------------------------------------------------------------
def _ref_forward(params, x):
    def conv_bn_relu(a, w, scale, bias, stride, pad):
        y = jax.lax.conv_general_dilated(
            a, w, window_strides=(stride, stride),
            padding=[(pad, pad), (pad, pad)],
            dimension_numbers=("NHWC", "HWIO", "NHWC"))
        return jax.nn.relu(y * scale + bias)

    def deconv_bn_relu(a, w, scale, bias, u):
        n, h, ww, _ = a.shape
        co = w.shape[3]
        y = jnp.einsum("nhwi,pqio->nhpwqo", a, w).reshape(n, h * u, ww * u, co)
        return jax.nn.relu(y * scale + bias)

    ups, a = [], x
    for li, blk in enumerate(params["blocks"]):
        for (w, scale, bias, stride) in blk:
            a = conv_bn_relu(a, w, scale, bias, stride, w.shape[0] // 2)
        if len(params["deblocks"]) > 0:
            kind, w, scale, bias, st = params["deblocks"][li]
            if kind == "deconv":
                ups.append(deconv_bn_relu(a, w, scale, bias, st))
            else:
                ups.append(conv_bn_relu(a, w, scale, bias, st, 0))
        else:
            ups.append(a)
    out = jnp.concatenate(ups, axis=-1) if len(ups) > 1 else ups[0]
    if len(params["deblocks"]) > len(params["blocks"]):
        _, w, scale, bias, st = params["deblocks"][-1]
        out = deconv_bn_relu(out, w, scale, bias, st)
    return out


if __name__ == "__main__":
    key = jax.random.PRNGKey(0)
    k_in, k_par = jax.random.split(key)

    input_channels = 4
    N, H, W = 2, 16, 16
    spatial_features = jax.random.normal(
        k_in, (N, H, W, input_channels), jnp.float32)   # layout: NHWC

    params = init_params(k_par, MODEL_CFG, input_channels)
    forward = jax.jit(build_forward(params, N, H, W, input_channels))

    out = forward(spatial_features)
    out = jax.block_until_ready(out)

    expected_c = sum(MODEL_CFG["NUM_UPSAMPLE_FILTERS"])
    assert out.shape == (N, H, W, expected_c), out.shape
    assert bool(jnp.all(jnp.isfinite(out)))

    # f32 reference (bf16 MXU operands in the kernel -> loose tolerance)
    ref = jax.block_until_ready(_ref_forward(params, spatial_features))
    assert np.allclose(np.asarray(out), np.asarray(ref), atol=0.1, rtol=0.1), (
        float(np.max(np.abs(np.asarray(out) - np.asarray(ref)))))

    print("KERNEL_OK")
</pallas_src>

<mosaic_0001>
module attributes {stable_mosaic.version = 11 : i64} {
  func.func @kernel(%arg0: memref<2x16x128xf32, #tpu.memory_space<vmem>>, %arg1: memref<384x128xbf16, #tpu.memory_space<vmem>>, %arg2: memref<1x128xf32, #tpu.memory_space<vmem>>, %arg3: memref<384x128xbf16, #tpu.memory_space<vmem>>, %arg4: memref<1x128xf32, #tpu.memory_space<vmem>>, %arg5: memref<128x256xbf16, #tpu.memory_space<vmem>>, %arg6: memref<1x256xf32, #tpu.memory_space<vmem>>, %arg7: memref<384x128xbf16, #tpu.memory_space<vmem>>, %arg8: memref<1x128xf32, #tpu.memory_space<vmem>>, %arg9: memref<48x32xbf16, #tpu.memory_space<vmem>>, %arg10: memref<384x128xbf16, #tpu.memory_space<vmem>>, %arg11: memref<1x128xf32, #tpu.memory_space<vmem>>, %arg12: memref<128x512xbf16, #tpu.memory_space<vmem>>, %arg13: memref<1x512xf32, #tpu.memory_space<vmem>>, %arg14: memref<2x16x256xf32, #tpu.memory_space<vmem>>, %arg15: memref<2x8x512xf32, #tpu.memory_space<vmem>>, %arg16: memref<2x18x128xf32, #tpu.memory_space<vmem>>, %arg17: memref<2x18x128xf32, #tpu.memory_space<vmem>>, %arg18: memref<2x10x128xf32, #tpu.memory_space<vmem>>) attributes {dimension_semantics = [], scalar_prefetch = 0 : i64, scratch_operands = 3 : i64, tpu.core_type = #tpu.core_type<tc>} {
    %c0 = arith.constant 0 : index
    %c0_0 = arith.constant 0 : index
    %c0_1 = arith.constant 0 : index
    %0 = vector.load %arg0[%c0, %c0_0, %c0_1] : memref<2x16x128xf32, #tpu.memory_space<vmem>>, vector<2x16x128xf32>
    %cst = arith.constant 0.000000e+00 : f32
    %1 = vector.broadcast %cst : f32 to vector<2x18x128xf32>
    %c0_2 = arith.constant 0 : index
    %c0_3 = arith.constant 0 : index
    %c0_4 = arith.constant 0 : index
    %2 = vector.load %arg16[%c0_2, %c0_3, %c0_4] : memref<2x18x128xf32, #tpu.memory_space<vmem>>, vector<2x18x128xf32>
    tpu.vector_store %arg16[%c0_2, %c0_3, %c0_4], %1 {strides = array<i32>} : memref<2x18x128xf32, #tpu.memory_space<vmem>>, vector<2x18x128xf32>,
    %c0_5 = arith.constant 0 : index
    %c1 = arith.constant 1 : index
    %c0_6 = arith.constant 0 : index
    %3 = vector.load %arg16[%c0_5, %c1, %c0_6] : memref<2x18x128xf32, #tpu.memory_space<vmem>>, vector<2x16x128xf32>
    tpu.vector_store %arg16[%c0_5, %c1, %c0_6], %0 {strides = array<i32>} : memref<2x18x128xf32, #tpu.memory_space<vmem>>, vector<2x16x128xf32>,
    %c0_7 = arith.constant 0 : index
    %c0_8 = arith.constant 0 : index
    %c0_9 = arith.constant 0 : index
    %4 = vector.load %arg16[%c0_7, %c0_8, %c0_9] : memref<2x18x128xf32, #tpu.memory_space<vmem>>, vector<2x16x128xf32>
    %c0_10 = arith.constant 0 : index
    %c1_11 = arith.constant 1 : index
    %c0_12 = arith.constant 0 : index
    %5 = vector.load %arg16[%c0_10, %c1_11, %c0_12] : memref<2x18x128xf32, #tpu.memory_space<vmem>>, vector<2x16x128xf32>
    %c0_13 = arith.constant 0 : index
    %c2 = arith.constant 2 : index
    %c0_14 = arith.constant 0 : index
    %6 = vector.load %arg16[%c0_13, %c2, %c0_14] : memref<2x18x128xf32, #tpu.memory_space<vmem>>, vector<2x16x128xf32>
    %7 = tpu.concatenate %4, %5, %6 in 2 : vector<2x16x128xf32>, vector<2x16x128xf32>, vector<2x16x128xf32> -> vector<2x16x384xf32>
    %8 = vector.shape_cast %7 : vector<2x16x384xf32> to vector<32x384xf32>
    %9 = arith.truncf %8 : vector<32x384xf32> to vector<32x384xbf16>
    %c0_15 = arith.constant 0 : index
    %c0_16 = arith.constant 0 : index
    %10 = vector.load %arg1[%c0_15, %c0_16] : memref<384x128xbf16, #tpu.memory_space<vmem>>, vector<384x128xbf16>
    %cst_17 = arith.constant dense<0.000000e+00> : vector<32x128xf32>
    %11 = tpu.matmul %9, %10, %cst_17 {dimension_numbers = #tpu.dot_dimension_numbers<[1], [0], [0], [1], [0, 0, 1, 1], [], []>} : vector<32x384xbf16>, vector<384x128xbf16>, vector<32x128xf32> -> vector<32x128xf32>
    %c0_18 = arith.constant 0 : index
    %c0_19 = arith.constant 0 : index
    %12 = vector.load %arg2[%c0_18, %c0_19] : memref<1x128xf32, #tpu.memory_space<vmem>>, vector<1x128xf32>
    %13 = vector.broadcast %12 : vector<1x128xf32> to vector<32x128xf32>
    %14 = arith.addf %11, %13 : vector<32x128xf32>
    %cst_20 = arith.constant 0.000000e+00 : f32
    %15 = vector.broadcast %cst_20 : f32 to vector<32x128xf32>
    %16 = arith.maximumf %14, %15 : vector<32x128xf32>
    %17 = vector.shape_cast %16 : vector<32x128xf32> to vector<2x16x128xf32>
    %cst_21 = arith.constant 0.000000e+00 : f32
    %18 = vector.broadcast %cst_21 : f32 to vector<2x18x128xf32>
    %c0_22 = arith.constant 0 : index
    %c0_23 = arith.constant 0 : index
    %c0_24 = arith.constant 0 : index
    %19 = vector.load %arg17[%c0_22, %c0_23, %c0_24] : memref<2x18x128xf32, #tpu.memory_space<vmem>>, vector<2x18x128xf32>
    tpu.vector_store %arg17[%c0_22, %c0_23, %c0_24], %18 {strides = array<i32>} : memref<2x18x128xf32, #tpu.memory_space<vmem>>, vector<2x18x128xf32>,
    %c0_25 = arith.constant 0 : index
    %c1_26 = arith.constant 1 : index
    %c0_27 = arith.constant 0 : index
    %20 = vector.load %arg17[%c0_25, %c1_26, %c0_27] : memref<2x18x128xf32, #tpu.memory_space<vmem>>, vector<2x16x128xf32>
    tpu.vector_store %arg17[%c0_25, %c1_26, %c0_27], %17 {strides = array<i32>} : memref<2x18x128xf32, #tpu.memory_space<vmem>>, vector<2x16x128xf32>,
    %c0_28 = arith.constant 0 : index
    %c0_29 = arith.constant 0 : index
    %c0_30 = arith.constant 0 : index
    %21 = vector.load %arg17[%c0_28, %c0_29, %c0_30] : memref<2x18x128xf32, #tpu.memory_space<vmem>>, vector<2x16x128xf32>
    %c0_31 = arith.constant 0 : index
    %c1_32 = arith.constant 1 : index
    %c0_33 = arith.constant 0 : index
    %22 = vector.load %arg17[%c0_31, %c1_32, %c0_33] : memref<2x18x128xf32, #tpu.memory_space<vmem>>, vector<2x16x128xf32>
    %c0_34 = arith.constant 0 : index
    %c2_35 = arith.constant 2 : index
    %c0_36 = arith.constant 0 : index
    %23 = vector.load %arg17[%c0_34, %c2_35, %c0_36] : memref<2x18x128xf32, #tpu.memory_space<vmem>>, vector<2x16x128xf32>
    %24 = tpu.concatenate %21, %22, %23 in 2 : vector<2x16x128xf32>, vector<2x16x128xf32>, vector<2x16x128xf32> -> vector<2x16x384xf32>
    %25 = vector.shape_cast %24 : vector<2x16x384xf32> to vector<32x384xf32>
    %26 = arith.truncf %25 : vector<32x384xf32> to vector<32x384xbf16>
    %c0_37 = arith.constant 0 : index
    %c0_38 = arith.constant 0 : index
    %27 = vector.load %arg3[%c0_37, %c0_38] : memref<384x128xbf16, #tpu.memory_space<vmem>>, vector<384x128xbf16>
    %cst_39 = arith.constant dense<0.000000e+00> : vector<32x128xf32>
    %28 = tpu.matmul %26, %27, %cst_39 {dimension_numbers = #tpu.dot_dimension_numbers<[1], [0], [0], [1], [0, 0, 1, 1], [], []>} : vector<32x384xbf16>, vector<384x128xbf16>, vector<32x128xf32> -> vector<32x128xf32>
    %c0_40 = arith.constant 0 : index
    %c0_41 = arith.constant 0 : index
    %29 = vector.load %arg4[%c0_40, %c0_41] : memref<1x128xf32, #tpu.memory_space<vmem>>, vector<1x128xf32>
    %30 = vector.broadcast %29 : vector<1x128xf32> to vector<32x128xf32>
    %31 = arith.addf %28, %30 : vector<32x128xf32>
    %cst_42 = arith.constant 0.000000e+00 : f32
    %32 = vector.broadcast %cst_42 : f32 to vector<32x128xf32>
    %33 = arith.maximumf %31, %32 : vector<32x128xf32>
    %34 = vector.shape_cast %33 : vector<32x128xf32> to vector<2x16x128xf32>
    %35 = vector.shape_cast %34 : vector<2x16x128xf32> to vector<32x128xf32>
    %36 = arith.truncf %35 : vector<32x128xf32> to vector<32x128xbf16>
    %c0_43 = arith.constant 0 : index
    %c0_44 = arith.constant 0 : index
    %37 = vector.load %arg5[%c0_43, %c0_44] : memref<128x256xbf16, #tpu.memory_space<vmem>>, vector<128x256xbf16>
    %cst_45 = arith.constant dense<0.000000e+00> : vector<32x256xf32>
    %38 = tpu.matmul %36, %37, %cst_45 {dimension_numbers = #tpu.dot_dimension_numbers<[1], [0], [0], [1], [0, 0, 1, 1], [], []>} : vector<32x128xbf16>, vector<128x256xbf16>, vector<32x256xf32> -> vector<32x256xf32>
    %c0_46 = arith.constant 0 : index
    %c0_47 = arith.constant 0 : index
    %39 = vector.load %arg6[%c0_46, %c0_47] : memref<1x256xf32, #tpu.memory_space<vmem>>, vector<1x256xf32>
    %40 = vector.broadcast %39 : vector<1x256xf32> to vector<32x256xf32>
    %41 = arith.addf %38, %40 : vector<32x256xf32>
    %cst_48 = arith.constant 0.000000e+00 : f32
    %42 = vector.broadcast %cst_48 : f32 to vector<32x256xf32>
    %43 = arith.maximumf %41, %42 : vector<32x256xf32>
    %44 = vector.shape_cast %43 : vector<32x256xf32> to vector<2x16x256xf32>
    %c0_49 = arith.constant 0 : index
    %c0_50 = arith.constant 0 : index
    %c0_51 = arith.constant 0 : index
    %45 = vector.load %arg14[%c0_49, %c0_50, %c0_51] : memref<2x16x256xf32, #tpu.memory_space<vmem>>, vector<2x16x256xf32>
    tpu.vector_store %arg14[%c0_49, %c0_50, %c0_51], %44 {strides = array<i32>} : memref<2x16x256xf32, #tpu.memory_space<vmem>>, vector<2x16x256xf32>,
    %46 = vector.shape_cast %34 : vector<2x16x128xf32> to vector<32x128xf32>
    %47 = arith.truncf %46 : vector<32x128xf32> to vector<32x128xbf16>
    %c0_52 = arith.constant 0 : index
    %c0_53 = arith.constant 0 : index
    %48 = vector.load %arg9[%c0_52, %c0_53] : memref<48x32xbf16, #tpu.memory_space<vmem>>, vector<48x32xbf16>
    %cst_54 = arith.constant dense<0.000000e+00> : vector<48x128xf32>
    %49 = tpu.matmul %48, %47, %cst_54 {dimension_numbers = #tpu.dot_dimension_numbers<[1], [0], [0], [1], [0, 0, 1, 1], [], []>} : vector<48x32xbf16>, vector<32x128xbf16>, vector<48x128xf32> -> vector<48x128xf32>
    %50 = arith.truncf %49 : vector<48x128xf32> to vector<48x128xbf16>
    %51 = vector.extract_strided_slice %50 {offsets = [0, 0], sizes = [16, 128], strides = [1, 1]} : vector<48x128xbf16> to vector<16x128xbf16>
    %52 = vector.extract_strided_slice %50 {offsets = [16, 0], sizes = [16, 128], strides = [1, 1]} : vector<48x128xbf16> to vector<16x128xbf16>
    %53 = vector.extract_strided_slice %50 {offsets = [32, 0], sizes = [16, 128], strides = [1, 1]} : vector<48x128xbf16> to vector<16x128xbf16>
    %54 = tpu.concatenate %51, %52, %53 in 1 : vector<16x128xbf16>, vector<16x128xbf16>, vector<16x128xbf16> -> vector<16x384xbf16>
    %c0_55 = arith.constant 0 : index
    %c0_56 = arith.constant 0 : index
    %55 = vector.load %arg7[%c0_55, %c0_56] : memref<384x128xbf16, #tpu.memory_space<vmem>>, vector<384x128xbf16>
    %cst_57 = arith.constant dense<0.000000e+00> : vector<16x128xf32>
    %56 = tpu.matmul %54, %55, %cst_57 {dimension_numbers = #tpu.dot_dimension_numbers<[1], [0], [0], [1], [0, 0, 1, 1], [], []>} : vector<16x384xbf16>, vector<384x128xbf16>, vector<16x128xf32> -> vector<16x128xf32>
    %c0_58 = arith.constant 0 : index
    %c0_59 = arith.constant 0 : index
    %57 = vector.load %arg8[%c0_58, %c0_59] : memref<1x128xf32, #tpu.memory_space<vmem>>, vector<1x128xf32>
    %58 = vector.broadcast %57 : vector<1x128xf32> to vector<16x128xf32>
    %59 = arith.addf %56, %58 : vector<16x128xf32>
    %cst_60 = arith.constant 0.000000e+00 : f32
    %60 = vector.broadcast %cst_60 : f32 to vector<16x128xf32>
    %61 = arith.maximumf %59, %60 : vector<16x128xf32>
    %62 = vector.shape_cast %61 : vector<16x128xf32> to vector<2x8x128xf32>
    %cst_61 = arith.constant 0.000000e+00 : f32
    %63 = vector.broadcast %cst_61 : f32 to vector<2x10x128xf32>
    %c0_62 = arith.constant 0 : index
    %c0_63 = arith.constant 0 : index
    %c0_64 = arith.constant 0 : index
    %64 = vector.load %arg18[%c0_62, %c0_63, %c0_64] : memref<2x10x128xf32, #tpu.memory_space<vmem>>, vector<2x10x128xf32>
    tpu.vector_store %arg18[%c0_62, %c0_63, %c0_64], %63 {strides = array<i32>} : memref<2x10x128xf32, #tpu.memory_space<vmem>>, vector<2x10x128xf32>,
    %c0_65 = arith.constant 0 : index
    %c1_66 = arith.constant 1 : index
    %c0_67 = arith.constant 0 : index
    %65 = vector.load %arg18[%c0_65, %c1_66, %c0_67] : memref<2x10x128xf32, #tpu.memory_space<vmem>>, vector<2x8x128xf32>
    tpu.vector_store %arg18[%c0_65, %c1_66, %c0_67], %62 {strides = array<i32>} : memref<2x10x128xf32, #tpu.memory_space<vmem>>, vector<2x8x128xf32>,
    %c0_68 = arith.constant 0 : index
    %c0_69 = arith.constant 0 : index
    %c0_70 = arith.constant 0 : index
    %66 = vector.load %arg18[%c0_68, %c0_69, %c0_70] : memref<2x10x128xf32, #tpu.memory_space<vmem>>, vector<2x8x128xf32>
    %c0_71 = arith.constant 0 : index
    %c1_72 = arith.constant 1 : index
    %c0_73 = arith.constant 0 : index
    %67 = vector.load %arg18[%c0_71, %c1_72, %c0_73] : memref<2x10x128xf32, #tpu.memory_space<vmem>>, vector<2x8x128xf32>
    %c0_74 = arith.constant 0 : index
    %c2_75 = arith.constant 2 : index
    %c0_76 = arith.constant 0 : index
    %68 = vector.load %arg18[%c0_74, %c2_75, %c0_76] : memref<2x10x128xf32, #tpu.memory_space<vmem>>, vector<2x8x128xf32>
    %69 = tpu.concatenate %66, %67, %68 in 2 : vector<2x8x128xf32>, vector<2x8x128xf32>, vector<2x8x128xf32> -> vector<2x8x384xf32>
    %70 = vector.shape_cast %69 : vector<2x8x384xf32> to vector<16x384xf32>
    %71 = arith.truncf %70 : vector<16x384xf32> to vector<16x384xbf16>
    %c0_77 = arith.constant 0 : index
    %c0_78 = arith.constant 0 : index
    %72 = vector.load %arg10[%c0_77, %c0_78] : memref<384x128xbf16, #tpu.memory_space<vmem>>, vector<384x128xbf16>
    %cst_79 = arith.constant dense<0.000000e+00> : vector<16x128xf32>
    %73 = tpu.matmul %71, %72, %cst_79 {dimension_numbers = #tpu.dot_dimension_numbers<[1], [0], [0], [1], [0, 0, 1, 1], [], []>} : vector<16x384xbf16>, vector<384x128xbf16>, vector<16x128xf32> -> vector<16x128xf32>
    %c0_80 = arith.constant 0 : index
    %c0_81 = arith.constant 0 : index
    %74 = vector.load %arg11[%c0_80, %c0_81] : memref<1x128xf32, #tpu.memory_space<vmem>>, vector<1x128xf32>
    %75 = vector.broadcast %74 : vector<1x128xf32> to vector<16x128xf32>
    %76 = arith.addf %73, %75 : vector<16x128xf32>
    %cst_82 = arith.constant 0.000000e+00 : f32
    %77 = vector.broadcast %cst_82 : f32 to vector<16x128xf32>
    %78 = arith.maximumf %76, %77 : vector<16x128xf32>
    %79 = vector.shape_cast %78 : vector<16x128xf32> to vector<2x8x128xf32>
    %80 = vector.shape_cast %79 : vector<2x8x128xf32> to vector<16x128xf32>
    %81 = arith.truncf %80 : vector<16x128xf32> to vector<16x128xbf16>
    %c0_83 = arith.constant 0 : index
    %c0_84 = arith.constant 0 : index
    %82 = vector.load %arg12[%c0_83, %c0_84] : memref<128x512xbf16, #tpu.memory_space<vmem>>, vector<128x512xbf16>
    %cst_85 = arith.constant dense<0.000000e+00> : vector<16x512xf32>
    %83 = tpu.matmul %81, %82, %cst_85 {dimension_numbers = #tpu.dot_dimension_numbers<[1], [0], [0], [1], [0, 0, 1, 1], [], []>} : vector<16x128xbf16>, vector<128x512xbf16>, vector<16x512xf32> -> vector<16x512xf32>
    %c0_86 = arith.constant 0 : index
    %c0_87 = arith.constant 0 : index
    %84 = vector.load %arg13[%c0_86, %c0_87] : memref<1x512xf32, #tpu.memory_space<vmem>>, vector<1x512xf32>
    %85 = vector.broadcast %84 : vector<1x512xf32> to vector<16x512xf32>
    %86 = arith.addf %83, %85 : vector<16x512xf32>
    %cst_88 = arith.constant 0.000000e+00 : f32
    %87 = vector.broadcast %cst_88 : f32 to vector<16x512xf32>
    %88 = arith.maximumf %86, %87 : vector<16x512xf32>
    %89 = vector.shape_cast %88 : vector<16x512xf32> to vector<2x8x512xf32>
    %c0_89 = arith.constant 0 : index
    %c0_90 = arith.constant 0 : index
    %c0_91 = arith.constant 0 : index
    %90 = vector.load %arg15[%c0_89, %c0_90, %c0_91] : memref<2x8x512xf32, #tpu.memory_space<vmem>>, vector<2x8x512xf32>
    tpu.vector_store %arg15[%c0_89, %c0_90, %c0_91], %89 {strides = array<i32>} : memref<2x8x512xf32, #tpu.memory_space<vmem>>, vector<2x8x512xf32>,
    return
  }
}

</mosaic_0001>

<llo_original>
// kernel: forward.1
$region0: #{forward.1}
  #allocation0 [shape = 'u32[]', space=smem, size = 0x4, offset = 0x4, fixed_abs, tag = 'smem constant byte address 0x4 - core index']
  #allocation1 [shape = 'u32[144,128]{1,0:T(1,128)}', space=vmem, size = 0x12000, scoped, tag = 'internal scratch']
  #allocation2 [shape = 'f32[2,18,128]{2,1,0:T(8,128)}', space=vmem, size = 0x6000, scoped, tag = 'scratch operand']
  #allocation3 [shape = 'f32[2,18,128]{2,1,0:T(8,128)}', space=vmem, size = 0x6000, scoped, tag = 'scratch operand']
  #allocation4 [shape = 'f32[2,10,128]{2,1,0:T(8,128)}', space=vmem, size = 0x4000, scoped, tag = 'scratch operand']
  %s0 = inlined_call_operand.vmem [shape: f32[2,16,128], index: 0, kind: input, shape index: {}]
  %s1 = inlined_call_operand.vmem [shape: bf16[384,128], index: 1, kind: input, shape index: {}]
  %s2 = inlined_call_operand.vmem [shape: f32[1,128], index: 2, kind: input, shape index: {}]
  %s3 = inlined_call_operand.vmem [shape: bf16[384,128], index: 3, kind: input, shape index: {}]
  %s4 = inlined_call_operand.vmem [shape: f32[1,128], index: 4, kind: input, shape index: {}]
  %s5 = inlined_call_operand.vmem [shape: bf16[128,256], index: 5, kind: input, shape index: {}]
  %s6 = inlined_call_operand.vmem [shape: f32[1,256], index: 6, kind: input, shape index: {}]
  %s7 = inlined_call_operand.vmem [shape: bf16[384,128], index: 7, kind: input, shape index: {}]
  %s8 = inlined_call_operand.vmem [shape: f32[1,128], index: 8, kind: input, shape index: {}]
  %s9 = inlined_call_operand.vmem [shape: bf16[48,32], index: 9, kind: input, shape index: {}]
  %s10 = inlined_call_operand.vmem [shape: bf16[384,128], index: 10, kind: input, shape index: {}]
  %s11 = inlined_call_operand.vmem [shape: f32[1,128], index: 11, kind: input, shape index: {}]
  %s12 = inlined_call_operand.vmem [shape: bf16[128,512], index: 12, kind: input, shape index: {}]
  %s13 = inlined_call_operand.vmem [shape: f32[1,512], index: 13, kind: input, shape index: {}]
  %s14 = inlined_call_operand.vmem [shape: f32[2,16,256], index: 14, kind: output, shape index: {0}]
  %s15 = inlined_call_operand.vmem [shape: f32[2,8,512], index: 15, kind: output, shape index: {1}]
  %16 = xla_tuple %s14, %s15
  %s17 = sld [smem:[#allocation0]]
  $region74: #{forward.1} parent=0
    _
  %s19 = ssub.s32 1, %s17
  %s20 = scalar_select 0, %s19, %s17
  // Predicated region
  $region2: #{forward.1} parent=0 // pred_check
    _
  $region3: #{forward.1} parent=0 // pred_check_branch
    %22 = sbr.rel (0) target = $region5
  $region4: #{forward.1} parent=0 // pred_region
    _
  $region5: #{forward.1} parent=0 // pred_fallthru
    _
  // Predicated region
  $region6: #{forward.1} parent=0 // pred_check
    _
  $region7: #{forward.1} parent=0 // pred_check_branch
    %24 = sbr.rel (0) target = $region9
  $region8: #{forward.1} parent=0 // pred_region
    _
  $region9: #{forward.1} parent=0 // pred_fallthru
    _
  // Predicated region
  $region10: #{forward.1} parent=0 // pred_check
    _
  $region11: #{forward.1} parent=0 // pred_check_branch
    %26 = sbr.rel (0) target = $region13
  $region12: #{forward.1} parent=0 // pred_region
    _
  $region13: #{forward.1} parent=0 // pred_fallthru
    _
  // Predicated region
  $region14: #{forward.1} parent=0 // pred_check
    _
  $region15: #{forward.1} parent=0 // pred_check_branch
    %28 = sbr.rel (0) target = $region17
  $region16: #{forward.1} parent=0 // pred_region
    _
  $region17: #{forward.1} parent=0 // pred_fallthru
    _
  // Predicated region
  $region18: #{forward.1} parent=0 // pred_check
    _
  $region19: #{forward.1} parent=0 // pred_check_branch
    %30 = sbr.rel (0) target = $region21
  $region20: #{forward.1} parent=0 // pred_region
    _
  $region21: #{forward.1} parent=0 // pred_fallthru
    _
  // Predicated region
  $region22: #{forward.1} parent=0 // pred_check
    _
  $region23: #{forward.1} parent=0 // pred_check_branch
    %32 = sbr.rel (0) target = $region25
  $region24: #{forward.1} parent=0 // pred_region
    _
  $region25: #{forward.1} parent=0 // pred_fallthru
    _
  // Predicated region
  $region26: #{forward.1} parent=0 // pred_check
    _
  $region27: #{forward.1} parent=0 // pred_check_branch
    %34 = sbr.rel (0) target = $region29
  $region28: #{forward.1} parent=0 // pred_region
    _
  $region29: #{forward.1} parent=0 // pred_fallthru
    _
  // Predicated region
  $region30: #{forward.1} parent=0 // pred_check
    _
  $region31: #{forward.1} parent=0 // pred_check_branch
    %36 = sbr.rel (0) target = $region33
  $region32: #{forward.1} parent=0 // pred_region
    _
  $region33: #{forward.1} parent=0 // pred_fallthru
    _
  // Predicated region
  $region34: #{forward.1} parent=0 // pred_check
    _
  $region35: #{forward.1} parent=0 // pred_check_branch
    %38 = sbr.rel (0) target = $region37
  $region36: #{forward.1} parent=0 // pred_region
    _
  $region37: #{forward.1} parent=0 // pred_fallthru
    _
  // Predicated region
  $region38: #{forward.1} parent=0 // pred_check
    _
  $region39: #{forward.1} parent=0 // pred_check_branch
    %40 = sbr.rel (0) target = $region41
  $region40: #{forward.1} parent=0 // pred_region
    _
  $region41: #{forward.1} parent=0 // pred_fallthru
    _
  // Predicated region
  $region42: #{forward.1} parent=0 // pred_check
    _
  $region43: #{forward.1} parent=0 // pred_check_branch
    %42 = sbr.rel (0) target = $region45
  $region44: #{forward.1} parent=0 // pred_region
    _
  $region45: #{forward.1} parent=0 // pred_fallthru
    _
  // Predicated region
  $region46: #{forward.1} parent=0 // pred_check
    _
  $region47: #{forward.1} parent=0 // pred_check_branch
    %44 = sbr.rel (0) target = $region49
  $region48: #{forward.1} parent=0 // pred_region
    _
  $region49: #{forward.1} parent=0 // pred_fallthru
    _
  // Predicated region
  $region50: #{forward.1} parent=0 // pred_check
    _
  $region51: #{forward.1} parent=0 // pred_check_branch
    %46 = sbr.rel (0) target = $region53
  $region52: #{forward.1} parent=0 // pred_region
    _
  $region53: #{forward.1} parent=0 // pred_fallthru
    _
  // Predicated region
  $region54: #{forward.1} parent=0 // pred_check
    _
  $region55: #{forward.1} parent=0 // pred_check_branch
    %48 = sbr.rel (0) target = $region57
  $region56: #{forward.1} parent=0 // pred_region
    _
  $region57: #{forward.1} parent=0 // pred_fallthru
    _
  %v50 = vld [vmem:[%s0] sm:$0xff]
  %v51 = vld [vmem:[%s0 + $0x8] sm:$0xff]
  %v52 = vld [vmem:[%s0 + $0x10] sm:$0xff]
  %v53 = vld [vmem:[%s0 + $0x18] sm:$0xff]
  %54 = vst [vmem:[#allocation2] sm:$0xff] 0.0
  %55 = vst [vmem:[#allocation2 + $0x8] sm:$0xff] 0.0
  %56 = vst [vmem:[#allocation2 + $0x10] sm:$0x3] 0.0
  %57 = vst [vmem:[#allocation2 + $0x18] sm:$0xff] 0.0
  %58 = vst [vmem:[#allocation2 + $0x20] sm:$0xff] 0.0
  %59 = vst [vmem:[#allocation2 + $0x28] sm:$0x3] 0.0
  %60 = vst [vmem:[#allocation2 + $0x1] sm:$0xff] %v50
  %61 = vst [vmem:[#allocation2 + $0x9] sm:$0xff] %v51
  %62 = vst [vmem:[#allocation2 + $0x19] sm:$0xff] %v52
  %63 = vst [vmem:[#allocation2 + $0x21] sm:$0xff] %v53
  %v64 = vld [vmem:[#allocation2] sm:$0xff]
  %v65 = vld [vmem:[#allocation2 + $0x8] sm:$0xff]
  %v66 = vld [vmem:[#allocation2 + $0x18] sm:$0xff]
  %v67 = vld [vmem:[#allocation2 + $0x20] sm:$0xff]
  %v68 = vld [vmem:[#allocation2 + $0x1] sm:$0xff]
  %v69 = vld [vmem:[#allocation2 + $0x9] sm:$0xff]
  %v70 = vld [vmem:[#allocation2 + $0x19] sm:$0xff]
  %v71 = vld [vmem:[#allocation2 + $0x21] sm:$0xff]
  %v72 = vld [vmem:[#allocation2 + $0x2] sm:$0xff]
  %v73 = vld [vmem:[#allocation2 + $0xa] sm:$0xff]
  %v74 = vld [vmem:[#allocation2 + $0x1a] sm:$0xff]
  %v75 = vld [vmem:[#allocation2 + $0x22] sm:$0xff]
  %v76 = vpack.c.bf16 %v65, %v64
  %v77 = vpack.c.bf16 %v69, %v68
  %v78 = vpack.c.bf16 %v73, %v72
  %v79 = vpack.c.bf16 %v67, %v66
  %v80 = vpack.c.bf16 %v71, %v70
  %v81 = vpack.c.bf16 %v75, %v74
  %v82 = vld [vmem:[%s1] sm:$0xf]
  %v83 = vld [vmem:[%s1 + $0x4] sm:$0xf]
  %v84 = vld [vmem:[%s1 + $0x8] sm:$0xf]
  %v85 = vld [vmem:[%s1 + $0xc] sm:$0xf]
  %v86 = vld [vmem:[%s1 + $0x10] sm:$0xf]
  %v87 = vld [vmem:[%s1 + $0x14] sm:$0xf]
  %v88 = vld [vmem:[%s1 + $0x18] sm:$0xf]
  %v89 = vld [vmem:[%s1 + $0x1c] sm:$0xf]
  %v90 = vld [vmem:[%s1 + $0x20] sm:$0xf]
  %v91 = vld [vmem:[%s1 + $0x24] sm:$0xf]
  %v92 = vld [vmem:[%s1 + $0x28] sm:$0xf]
  %v93 = vld [vmem:[%s1 + $0x2c] sm:$0xf]
  %v94 = vld [vmem:[%s1 + $0x30] sm:$0xf]
  %v95 = vld [vmem:[%s1 + $0x34] sm:$0xf]
  %v96 = vld [vmem:[%s1 + $0x38] sm:$0xf]
  %v97 = vld [vmem:[%s1 + $0x3c] sm:$0xf]
  %v98 = vld [vmem:[%s1 + $0x40] sm:$0xf]
  %v99 = vld [vmem:[%s1 + $0x44] sm:$0xf]
  %v100 = vld [vmem:[%s1 + $0x48] sm:$0xf]
  %v101 = vld [vmem:[%s1 + $0x4c] sm:$0xf]
  %v102 = vld [vmem:[%s1 + $0x50] sm:$0xf]
  %v103 = vld [vmem:[%s1 + $0x54] sm:$0xf]
  %v104 = vld [vmem:[%s1 + $0x58] sm:$0xf]
  %v105 = vld [vmem:[%s1 + $0x5c] sm:$0xf]
  %v106 = vld [vmem:[%s1 + $0x60] sm:$0xf]
  %v107 = vld [vmem:[%s1 + $0x64] sm:$0xf]
  %v108 = vld [vmem:[%s1 + $0x68] sm:$0xf]
  %v109 = vld [vmem:[%s1 + $0x6c] sm:$0xf]
  %v110 = vld [vmem:[%s1 + $0x70] sm:$0xf]
  %v111 = vld [vmem:[%s1 + $0x74] sm:$0xf]
  %v112 = vld [vmem:[%s1 + $0x78] sm:$0xf]
  %v113 = vld [vmem:[%s1 + $0x7c] sm:$0xf]
  %v114 = vld [vmem:[%s1 + $0x80] sm:$0xf]
  %v115 = vld [vmem:[%s1 + $0x84] sm:$0xf]
  %v116 = vld [vmem:[%s1 + $0x88] sm:$0xf]
  %v117 = vld [vmem:[%s1 + $0x8c] sm:$0xf]
  %v118 = vld [vmem:[%s1 + $0x90] sm:$0xf]
  %v119 = vld [vmem:[%s1 + $0x94] sm:$0xf]
  %v120 = vld [vmem:[%s1 + $0x98] sm:$0xf]
  %v121 = vld [vmem:[%s1 + $0x9c] sm:$0xf]
  %v122 = vld [vmem:[%s1 + $0xa0] sm:$0xf]
  %v123 = vld [vmem:[%s1 + $0xa4] sm:$0xf]
  %v124 = vld [vmem:[%s1 + $0xa8] sm:$0xf]
  %v125 = vld [vmem:[%s1 + $0xac] sm:$0xf]
  %v126 = vld [vmem:[%s1 + $0xb0] sm:$0xf]
  %v127 = vld [vmem:[%s1 + $0xb4] sm:$0xf]
  %v128 = vld [vmem:[%s1 + $0xb8] sm:$0xf]
  %v129 = vld [vmem:[%s1 + $0xbc] sm:$0xf]
  %v130 = vld [vmem:[%s2] sm:$0x1]
  %v132 = vlaneseq
  %v133 = vshrl.u32 %v132, 7
  %v134 = vsub.s32 0, %v133
  %v135 = vrot.slane %v130, %v134
  %v185 = vunpack.c.l.b16 %v82
  %v186 = vunpack.c.l.b16 %v83
  %v187 = vunpack.c.l.b16 %v84
  %v188 = vunpack.c.l.b16 %v85
  %v189 = vunpack.c.l.b16 %v86
  %v190 = vunpack.c.l.b16 %v87
  %v191 = vunpack.c.l.b16 %v88
  %v192 = vunpack.c.l.b16 %v89
  %v193 = vunpack.c.l.b16 %v90
  %v194 = vunpack.c.l.b16 %v91
  %v195 = vunpack.c.l.b16 %v92
  %v196 = vunpack.c.l.b16 %v93
  %v197 = vunpack.c.l.b16 %v94
  %v198 = vunpack.c.l.b16 %v95
  %v199 = vunpack.c.l.b16 %v96
  %v200 = vunpack.c.l.b16 %v97
  %v201 = vunpack.c.l.b16 %v98
  %v202 = vunpack.c.l.b16 %v99
  %v203 = vunpack.c.l.b16 %v100
  %v204 = vunpack.c.l.b16 %v101
  %v205 = vunpack.c.l.b16 %v102
  %v206 = vunpack.c.l.b16 %v103
  %v207 = vunpack.c.l.b16 %v104
  %v208 = vunpack.c.l.b16 %v105
  %v209 = vunpack.c.l.b16 %v106
  %v210 = vunpack.c.l.b16 %v107
  %v211 = vunpack.c.l.b16 %v108
  %v212 = vunpack.c.l.b16 %v109
  %v213 = vunpack.c.l.b16 %v110
  %v214 = vunpack.c.l.b16 %v111
  %v215 = vunpack.c.l.b16 %v112
  %v216 = vunpack.c.l.b16 %v113
  %v217 = vunpack.c.l.b16 %v114
  %v218 = vunpack.c.l.b16 %v115
  %v219 = vunpack.c.l.b16 %v116
  %v220 = vunpack.c.l.b16 %v117
  %v221 = vunpack.c.l.b16 %v118
  %v222 = vunpack.c.l.b16 %v119
  %v223 = vunpack.c.l.b16 %v120
  %v224 = vunpack.c.l.b16 %v121
  %v225 = vunpack.c.l.b16 %v122
  %v226 = vunpack.c.l.b16 %v123
  %v227 = vunpack.c.l.b16 %v124
  %v228 = vunpack.c.l.b16 %v125
  %v229 = vunpack.c.l.b16 %v126
  %v230 = vunpack.c.l.b16 %v127
  %v231 = vunpack.c.l.b16 %v128
  %v232 = vunpack.c.l.b16 %v129
  %v233 = vpack.c.b16 %v186, %v185
  %v234 = vpack.c.b16 %v188, %v187
  %v235 = vpack.c.b16 %v190, %v189
  %v236 = vpack.c.b16 %v192, %v191
  %v237 = vpack.c.b16 %v194, %v193
  %v238 = vpack.c.b16 %v196, %v195
  %v239 = vpack.c.b16 %v198, %v197
  %v240 = vpack.c.b16 %v200, %v199
  %v241 = vpack.c.b16 %v202, %v201
  %v242 = vpack.c.b16 %v204, %v203
  %v243 = vpack.c.b16 %v206, %v205
  %v244 = vpack.c.b16 %v208, %v207
  %v245 = vpack.c.b16 %v210, %v209
  %v246 = vpack.c.b16 %v212, %v211
  %v247 = vpack.c.b16 %v214, %v213
  %v248 = vpack.c.b16 %v216, %v215
  %v249 = vpack.c.b16 %v218, %v217
  %v250 = vpack.c.b16 %v220, %v219
  %v251 = vpack.c.b16 %v222, %v221
  %v252 = vpack.c.b16 %v224, %v223
  %v253 = vpack.c.b16 %v226, %v225
  %v254 = vpack.c.b16 %v228, %v227
  %v255 = vpack.c.b16 %v230, %v229
  %v256 = vpack.c.b16 %v232, %v231
  %281 = vmatprep.subr.bf16.mxu0 0
  %282 = vmatpush1.bf16.msra.mxu0 %v233
  %283 = vmatprep.subr.bf16.mxu0 0
  %284 = vmatpush1.bf16.msra.mxu0 %v234
  %285 = vmatprep.subr.bf16.mxu0 0
  %286 = vmatpush1.bf16.msra.mxu0 %v235
  %287 = vmatprep.subr.bf16.mxu0 0
  %288 = vmatpush1.bf16.msra.mxu0 %v236
  %289 = vmatprep.subr.bf16.mxu0 0
  %290 = vmatpush1.bf16.msra.mxu0 %v237
  %291 = vmatprep.subr.bf16.mxu0 0
  %292 = vmatpush1.bf16.msra.mxu0 %v238
  %293 = vmatprep.subr.bf16.mxu0 0
  %294 = vmatpush1.bf16.msra.mxu0 %v239
  %295 = vmatprep.subr.bf16.mxu0 0
  %296 = vmatpush1.bf16.msra.mxu0 %v240
  %297 = vmatprep.subr.bf16.mxu0 0
  %298 = vmatpush1.bf16.msra.mxu0 %v241
  %299 = vmatprep.subr.bf16.mxu0 0
  %300 = vmatpush1.bf16.msra.mxu0 %v242
  %301 = vmatprep.subr.bf16.mxu0 0
  %302 = vmatpush1.bf16.msra.mxu0 %v243
  %303 = vmatprep.subr.bf16.mxu0 0
  %304 = vmatpush1.bf16.msra.mxu0 %v244
  %305 = vmatprep.subr.bf16.mxu0 0
  %306 = vmatpush1.bf16.msra.mxu0 %v245
  %307 = vmatprep.subr.bf16.mxu0 0
  %308 = vmatpush1.bf16.msra.mxu0 %v246
  %309 = vmatprep.subr.bf16.mxu0 0
  %310 = vmatpush1.bf16.msra.mxu0 %v247
  %311 = vmatprep.subr.bf16.mxu0 0
  %312 = vmatpush1.bf16.msra.mxu0 %v248
  %313 = vmatprep.mubr.bf16.mxu0 %v77
  %314 = vmatmul.mubr.bf16.gmra.mrb[0].mxu0 %v76
  %v315 = vpop.f32.mrb[0].mxu0
  %v316 = vadd.f32 %v135, %v315
  %v317 = vpop.f32.mrb[0].mxu0
  %v318 = vpop.f32.mrb[0].mxu0
  %v319 = vadd.f32 %v135, %v318
  %v320 = vpop.f32.mrb[0].mxu0
  %321 = vmatprep.mubr.bf16.mxu0 %v80
  %322 = vmatmul.mubr.bf16.gmra.mrb[0].mxu0 %v79
  %v323 = vpop.f32.mrb[0].mxu0
  %v324 = vadd.f32 %v135, %v323
  %v325 = vpop.f32.mrb[0].mxu0
  %v326 = vpop.f32.mrb[0].mxu0
  %v327 = vadd.f32 %v135, %v326
  %v328 = vpop.f32.mrb[0].mxu0
  %329 = vdwg.mxu0
  %330 = vmatprep.subr.bf16.mxu0 0
  %331 = vmatpush1.bf16.msra.mxu0 %v249
  %332 = vmatprep.subr.bf16.mxu0 0
  %333 = vmatpush1.bf16.msra.mxu0 %v250
  %334 = vmatprep.subr.bf16.mxu0 0
  %335 = vmatpush1.bf16.msra.mxu0 %v251
  %336 = vmatprep.subr.bf16.mxu0 0
  %337 = vmatpush1.bf16.msra.mxu0 %v252
  %338 = vmatprep.subr.bf16.mxu0 0
  %339 = vmatpush1.bf16.msra.mxu0 %v253
  %340 = vmatprep.subr.bf16.mxu0 0
  %341 = vmatpush1.bf16.msra.mxu0 %v254
  %342 = vmatprep.subr.bf16.mxu0 0
  %343 = vmatpush1.bf16.msra.mxu0 %v255
  %344 = vmatprep.subr.bf16.mxu0 0
  %345 = vmatpush1.bf16.msra.mxu0 %v256
  %346 = vmatprep.subr.bf16.mxu0 0
  %347 = vmatpush1.bf16.msra.mxu0 0
  %348 = vmatprep.subr.bf16.mxu0 0
  %349 = vmatpush1.bf16.msra.mxu0 0
  %350 = vmatprep.subr.bf16.mxu0 0
  %351 = vmatpush1.bf16.msra.mxu0 0
  %352 = vmatprep.subr.bf16.mxu0 0
  %353 = vmatpush1.bf16.msra.mxu0 0
  %354 = vmatprep.subr.bf16.mxu0 0
  %355 = vmatpush1.bf16.msra.mxu0 0
  %356 = vmatprep.subr.bf16.mxu0 0
  %357 = vmatpush1.bf16.msra.mxu0 0
  %358 = vmatprep.subr.bf16.mxu0 0
  %359 = vmatpush1.bf16.msra.mxu0 0
  %360 = vmatprep.subr.bf16.mxu0 0
  %361 = vmatpush1.bf16.msra.mxu0 0
  %362 = vmatprep.mubr.bf16.mxu0 0
  %363 = vmatmul.mubr.bf16.gmra.mrb[0].mxu0 %v78
  %v364 = vpop.f32.mrb[0].mxu0
  %v365 = vadd.f32 %v316, %v364
  %v366 = vpop.f32.mrb[0].mxu0
  %v367 = vpop.f32.mrb[0].mxu0
  %v368 = vadd.f32 %v319, %v367
  %v369 = vpop.f32.mrb[0].mxu0
  %370 = vmatprep.mubr.bf16.mxu0 0
  %371 = vmatmul.mubr.bf16.gmra.mrb[0].mxu0 %v81
  %v372 = vpop.f32.mrb[0].mxu0
  %v373 = vadd.f32 %v324, %v372
  %v374 = vpop.f32.mrb[0].mxu0
  %v375 = vpop.f32.mrb[0].mxu0
  %v376 = vadd.f32 %v327, %v375
  %v377 = vpop.f32.mrb[0].mxu0
  %378 = vdwg.mxu0
  %v379 = vmax.f32 %v365, 0.0
  %v380 = vmax.f32 %v368, 0.0
  %v381 = vmax.f32 %v373, 0.0
  %v382 = vmax.f32 %v376, 0.0
  %383 = vst [vmem:[#allocation3] sm:$0xff] 0.0
  %384 = vst [vmem:[#allocation3 + $0x8] sm:$0xff] 0.0
  %385 = vst [vmem:[#allocation3 + $0x10] sm:$0x3] 0.0
  %386 = vst [vmem:[#allocation3 + $0x18] sm:$0xff] 0.0
  %387 = vst [vmem:[#allocation3 + $0x20] sm:$0xff] 0.0
  %388 = vst [vmem:[#allocation3 + $0x28] sm:$0x3] 0.0
  %389 = vst [vmem:[#allocation3 + $0x1] sm:$0xff] %v379
  %390 = vst [vmem:[#allocation3 + $0x9] sm:$0xff] %v380
  %391 = vst [vmem:[#allocation3 + $0x19] sm:$0xff] %v381
  %392 = vst [vmem:[#allocation3 + $0x21] sm:$0xff] %v382
  %v393 = vld [vmem:[#allocation3] sm:$0xff]
  %v394 = vld [vmem:[#allocation3 + $0x8] sm:$0xff]
  %v395 = vld [vmem:[#allocation3 + $0x18] sm:$0xff]
  %v396 = vld [vmem:[#allocation3 + $0x20] sm:$0xff]
  %v397 = vld [vmem:[#allocation3 + $0x1] sm:$0xff]
  %v398 = vld [vmem:[#allocation3 + $0x9] sm:$0xff]
  %v399 = vld [vmem:[#allocation3 + $0x19] sm:$0xff]
  %v400 = vld [vmem:[#allocation3 + $0x21] sm:$0xff]
  %v401 = vld [vmem:[#allocation3 + $0x2] sm:$0xff]
  %v402 = vld [vmem:[#allocation3 + $0xa] sm:$0xff]
  %v403 = vld [vmem:[#allocation3 + $0x1a] sm:$0xff]
  %v404 = vld [vmem:[#allocation3 + $0x22] sm:$0xff]
  %v405 = vpack.c.bf16 %v394, %v393
  %v406 = vpack.c.bf16 %v398, %v397
  %v407 = vpack.c.bf16 %v402, %v401
  %v408 = vpack.c.bf16 %v396, %v395
  %v409 = vpack.c.bf16 %v400, %v399
  %v410 = vpack.c.bf16 %v404, %v403
  %v411 = vld [vmem:[%s3] sm:$0xf]
  %v412 = vld [vmem:[%s3 + $0x4] sm:$0xf]
  %v413 = vld [vmem:[%s3 + $0x8] sm:$0xf]
  %v414 = vld [vmem:[%s3 + $0xc] sm:$0xf]
  %v415 = vld [vmem:[%s3 + $0x10] sm:$0xf]
  %v416 = vld [vmem:[%s3 + $0x14] sm:$0xf]
  %v417 = vld [vmem:[%s3 + $0x18] sm:$0xf]
  %v418 = vld [vmem:[%s3 + $0x1c] sm:$0xf]
  %v419 = vld [vmem:[%s3 + $0x20] sm:$0xf]
  %v420 = vld [vmem:[%s3 + $0x24] sm:$0xf]
  %v421 = vld [vmem:[%s3 + $0x28] sm:$0xf]
  %v422 = vld [vmem:[%s3 + $0x2c] sm:$0xf]
  %v423 = vld [vmem:[%s3 + $0x30] sm:$0xf]
  %v424 = vld [vmem:[%s3 + $0x34] sm:$0xf]
  %v425 = vld [vmem:[%s3 + $0x38] sm:$0xf]
  %v426 = vld [vmem:[%s3 + $0x3c] sm:$0xf]
  %v427 = vld [vmem:[%s3 + $0x40] sm:$0xf]
  %v428 = vld [vmem:[%s3 + $0x44] sm:$0xf]
  %v429 = vld [vmem:[%s3 + $0x48] sm:$0xf]
  %v430 = vld [vmem:[%s3 + $0x4c] sm:$0xf]
  %v431 = vld [vmem:[%s3 + $0x50] sm:$0xf]
  %v432 = vld [vmem:[%s3 + $0x54] sm:$0xf]
  %v433 = vld [vmem:[%s3 + $0x58] sm:$0xf]
  %v434 = vld [vmem:[%s3 + $0x5c] sm:$0xf]
  %v435 = vld [vmem:[%s3 + $0x60] sm:$0xf]
  %v436 = vld [vmem:[%s3 + $0x64] sm:$0xf]
  %v437 = vld [vmem:[%s3 + $0x68] sm:$0xf]
  %v438 = vld [vmem:[%s3 + $0x6c] sm:$0xf]
  %v439 = vld [vmem:[%s3 + $0x70] sm:$0xf]
  %v440 = vld [vmem:[%s3 + $0x74] sm:$0xf]
  %v441 = vld [vmem:[%s3 + $0x78] sm:$0xf]
  %v442 = vld [vmem:[%s3 + $0x7c] sm:$0xf]
  %v443 = vld [vmem:[%s3 + $0x80] sm:$0xf]
  %v444 = vld [vmem:[%s3 + $0x84] sm:$0xf]
  %v445 = vld [vmem:[%s3 + $0x88] sm:$0xf]
  %v446 = vld [vmem:[%s3 + $0x8c] sm:$0xf]
  %v447 = vld [vmem:[%s3 + $0x90] sm:$0xf]
  %v448 = vld [vmem:[%s3 + $0x94] sm:$0xf]
  %v449 = vld [vmem:[%s3 + $0x98] sm:$0xf]
  %v450 = vld [vmem:[%s3 + $0x9c] sm:$0xf]
  %v451 = vld [vmem:[%s3 + $0xa0] sm:$0xf]
  %v452 = vld [vmem:[%s3 + $0xa4] sm:$0xf]
  %v453 = vld [vmem:[%s3 + $0xa8] sm:$0xf]
  %v454 = vld [vmem:[%s3 + $0xac] sm:$0xf]
  %v455 = vld [vmem:[%s3 + $0xb0] sm:$0xf]
  %v456 = vld [vmem:[%s3 + $0xb4] sm:$0xf]
  %v457 = vld [vmem:[%s3 + $0xb8] sm:$0xf]
  %v458 = vld [vmem:[%s3 + $0xbc] sm:$0xf]
  %v459 = vld [vmem:[%s4] sm:$0x1]
  %v461 = vlaneseq
  %v462 = vshrl.u32 %v461, 7
  %v463 = vsub.s32 0, %v462
  %v464 = vrot.slane %v459, %v463
  %v514 = vunpack.c.l.b16 %v411
  %v515 = vunpack.c.l.b16 %v412
  %v516 = vunpack.c.l.b16 %v413
  %v517 = vunpack.c.l.b16 %v414
  %v518 = vunpack.c.l.b16 %v415
  %v519 = vunpack.c.l.b16 %v416
  %v520 = vunpack.c.l.b16 %v417
  %v521 = vunpack.c.l.b16 %v418
  %v522 = vunpack.c.l.b16 %v419
  %v523 = vunpack.c.l.b16 %v420
  %v524 = vunpack.c.l.b16 %v421
  %v525 = vunpack.c.l.b16 %v422
  %v526 = vunpack.c.l.b16 %v423
  %v527 = vunpack.c.l.b16 %v424
  %v528 = vunpack.c.l.b16 %v425
  %v529 = vunpack.c.l.b16 %v426
  %v530 = vunpack.c.l.b16 %v427
  %v531 = vunpack.c.l.b16 %v428
  %v532 = vunpack.c.l.b16 %v429
  %v533 = vunpack.c.l.b16 %v430
  %v534 = vunpack.c.l.b16 %v431
  %v535 = vunpack.c.l.b16 %v432
  %v536 = vunpack.c.l.b16 %v433
  %v537 = vunpack.c.l.b16 %v434
  %v538 = vunpack.c.l.b16 %v435
  %v539 = vunpack.c.l.b16 %v436
  %v540 = vunpack.c.l.b16 %v437
  %v541 = vunpack.c.l.b16 %v438
  %v542 = vunpack.c.l.b16 %v439
  %v543 = vunpack.c.l.b16 %v440
  %v544 = vunpack.c.l.b16 %v441
  %v545 = vunpack.c.l.b16 %v442
  %v546 = vunpack.c.l.b16 %v443
  %v547 = vunpack.c.l.b16 %v444
  %v548 = vunpack.c.l.b16 %v445
  %v549 = vunpack.c.l.b16 %v446
  %v550 = vunpack.c.l.b16 %v447
  %v551 = vunpack.c.l.b16 %v448
  %v552 = vunpack.c.l.b16 %v449
  %v553 = vunpack.c.l.b16 %v450
  %v554 = vunpack.c.l.b16 %v451
  %v555 = vunpack.c.l.b16 %v452
  %v556 = vunpack.c.l.b16 %v453
  %v557 = vunpack.c.l.b16 %v454
  %v558 = vunpack.c.l.b16 %v455
  %v559 = vunpack.c.l.b16 %v456
  %v560 = vunpack.c.l.b16 %v457
  %v561 = vunpack.c.l.b16 %v458
  %v562 = vpack.c.b16 %v515, %v514
  %v563 = vpack.c.b16 %v517, %v516
  %v564 = vpack.c.b16 %v519, %v518
  %v565 = vpack.c.b16 %v521, %v520
  %v566 = vpack.c.b16 %v523, %v522
  %v567 = vpack.c.b16 %v525, %v524
  %v568 = vpack.c.b16 %v527, %v526
  %v569 = vpack.c.b16 %v529, %v528
  %v570 = vpack.c.b16 %v531, %v530
  %v571 = vpack.c.b16 %v533, %v532
  %v572 = vpack.c.b16 %v535, %v534
  %v573 = vpack.c.b16 %v537, %v536
  %v574 = vpack.c.b16 %v539, %v538
  %v575 = vpack.c.b16 %v541, %v540
  %v576 = vpack.c.b16 %v543, %v542
  %v577 = vpack.c.b16 %v545, %v544
  %v578 = vpack.c.b16 %v547, %v546
  %v579 = vpack.c.b16 %v549, %v548
  %v580 = vpack.c.b16 %v551, %v550
  %v581 = vpack.c.b16 %v553, %v552
  %v582 = vpack.c.b16 %v555, %v554
  %v583 = vpack.c.b16 %v557, %v556
  %v584 = vpack.c.b16 %v559, %v558
  %v585 = vpack.c.b16 %v561, %v560
  %610 = vmatprep.subr.bf16.mxu0 0
  %611 = vmatpush1.bf16.msra.mxu0 %v562
  %612 = vmatprep.subr.bf16.mxu0 0
  %613 = vmatpush1.bf16.msra.mxu0 %v563
  %614 = vmatprep.subr.bf16.mxu0 0
  %615 = vmatpush1.bf16.msra.mxu0 %v564
  %616 = vmatprep.subr.bf16.mxu0 0
  %617 = vmatpush1.bf16.msra.mxu0 %v565
  %618 = vmatprep.subr.bf16.mxu0 0
  %619 = vmatpush1.bf16.msra.mxu0 %v566
  %620 = vmatprep.subr.bf16.mxu0 0
  %621 = vmatpush1.bf16.msra.mxu0 %v567
  %622 = vmatprep.subr.bf16.mxu0 0
  %623 = vmatpush1.bf16.msra.mxu0 %v568
  %624 = vmatprep.subr.bf16.mxu0 0
  %625 = vmatpush1.bf16.msra.mxu0 %v569
  %626 = vmatprep.subr.bf16.mxu0 0
  %627 = vmatpush1.bf16.msra.mxu0 %v570
  %628 = vmatprep.subr.bf16.mxu0 0
  %629 = vmatpush1.bf16.msra.mxu0 %v571
  %630 = vmatprep.subr.bf16.mxu0 0
  %631 = vmatpush1.bf16.msra.mxu0 %v572
  %632 = vmatprep.subr.bf16.mxu0 0
  %633 = vmatpush1.bf16.msra.mxu0 %v573
  %634 = vmatprep.subr.bf16.mxu0 0
  %635 = vmatpush1.bf16.msra.mxu0 %v574
  %636 = vmatprep.subr.bf16.mxu0 0
  %637 = vmatpush1.bf16.msra.mxu0 %v575
  %638 = vmatprep.subr.bf16.mxu0 0
  %639 = vmatpush1.bf16.msra.mxu0 %v576
  %640 = vmatprep.subr.bf16.mxu0 0
  %641 = vmatpush1.bf16.msra.mxu0 %v577
  %642 = vmatprep.mubr.bf16.mxu0 %v406
  %643 = vmatmul.mubr.bf16.gmra.mrb[0].mxu0 %v405
  %v644 = vpop.f32.mrb[0].mxu0
  %v645 = vadd.f32 %v464, %v644
  %v646 = vpop.f32.mrb[0].mxu0
  %v647 = vpop.f32.mrb[0].mxu0
  %v648 = vadd.f32 %v464, %v647
  %v649 = vpop.f32.mrb[0].mxu0
  %650 = vmatprep.mubr.bf16.mxu0 %v409
  %651 = vmatmul.mubr.bf16.gmra.mrb[0].mxu0 %v408
  %v652 = vpop.f32.mrb[0].mxu0
  %v653 = vadd.f32 %v464, %v652
  %v654 = vpop.f32.mrb[0].mxu0
  %v655 = vpop.f32.mrb[0].mxu0
  %v656 = vadd.f32 %v464, %v655
  %v657 = vpop.f32.mrb[0].mxu0
  %658 = vdwg.mxu0
  %659 = vmatprep.subr.bf16.mxu0 0
  %660 = vmatpush1.bf16.msra.mxu0 %v578
  %661 = vmatprep.subr.bf16.mxu0 0
  %662 = vmatpush1.bf16.msra.mxu0 %v579
  %663 = vmatprep.subr.bf16.mxu0 0
  %664 = vmatpush1.bf16.msra.mxu0 %v580
  %665 = vmatprep.subr.bf16.mxu0 0
  %666 = vmatpush1.bf16.msra.mxu0 %v581
  %667 = vmatprep.subr.bf16.mxu0 0
  %668 = vmatpush1.bf16.msra.mxu0 %v582
  %669 = vmatprep.subr.bf16.mxu0 0
  %670 = vmatpush1.bf16.msra.mxu0 %v583
  %671 = vmatprep.subr.bf16.mxu0 0
  %672 = vmatpush1.bf16.msra.mxu0 %v584
  %673 = vmatprep.subr.bf16.mxu0 0
  %674 = vmatpush1.bf16.msra.mxu0 %v585
  %675 = vmatprep.subr.bf16.mxu0 0
  %676 = vmatpush1.bf16.msra.mxu0 0
  %677 = vmatprep.subr.bf16.mxu0 0
  %678 = vmatpush1.bf16.msra.mxu0 0
  %679 = vmatprep.subr.bf16.mxu0 0
  %680 = vmatpush1.bf16.msra.mxu0 0
  %681 = vmatprep.subr.bf16.mxu0 0
  %682 = vmatpush1.bf16.msra.mxu0 0
  %683 = vmatprep.subr.bf16.mxu0 0
  %684 = vmatpush1.bf16.msra.mxu0 0
  %685 = vmatprep.subr.bf16.mxu0 0
  %686 = vmatpush1.bf16.msra.mxu0 0
  %687 = vmatprep.subr.bf16.mxu0 0
  %688 = vmatpush1.bf16.msra.mxu0 0
  %689 = vmatprep.subr.bf16.mxu0 0
  %690 = vmatpush1.bf16.msra.mxu0 0
  %691 = vmatprep.mubr.bf16.mxu0 0
  %692 = vmatmul.mubr.bf16.gmra.mrb[0].mxu0 %v407
  %v693 = vpop.f32.mrb[0].mxu0
  %v694 = vadd.f32 %v645, %v693
  %v695 = vpop.f32.mrb[0].mxu0
  %v696 = vpop.f32.mrb[0].mxu0
  %v697 = vadd.f32 %v648, %v696
  %v698 = vpop.f32.mrb[0].mxu0
  %699 = vmatprep.mubr.bf16.mxu0 0
  %700 = vmatmul.mubr.bf16.gmra.mrb[0].mxu0 %v410
  %v701 = vpop.f32.mrb[0].mxu0
  %v702 = vadd.f32 %v653, %v701
  %v703 = vpop.f32.mrb[0].mxu0
  %v704 = vpop.f32.mrb[0].mxu0
  %v705 = vadd.f32 %v656, %v704
  %v706 = vpop.f32.mrb[0].mxu0
  %707 = vdwg.mxu0
  %v708 = vmax.f32 %v694, 0.0
  %v709 = vmax.f32 %v697, 0.0
  %v710 = vmax.f32 %v702, 0.0
  %v711 = vmax.f32 %v705, 0.0
  %v712 = vpack.c.bf16 %v709, %v708
  %v713 = vpack.c.bf16 %v711, %v710
  %v714 = vld [vmem:[%s5] sm:$0xff]
  %v715 = vld [vmem:[%s5 + $0x8] sm:$0xff]
  %v716 = vld [vmem:[%s5 + $0x10] sm:$0xff]
  %v717 = vld [vmem:[%s5 + $0x18] sm:$0xff]
  %v718 = vld [vmem:[%s5 + $0x20] sm:$0xff]
  %v719 = vld [vmem:[%s5 + $0x28] sm:$0xff]
  %v720 = vld [vmem:[%s5 + $0x30] sm:$0xff]
  %v721 = vld [vmem:[%s5 + $0x38] sm:$0xff]
  %v722 = vld [vmem:[%s5 + $0x40] sm:$0xff]
  %v723 = vld [vmem:[%s5 + $0x48] sm:$0xff]
  %v724 = vld [vmem:[%s5 + $0x50] sm:$0xff]
  %v725 = vld [vmem:[%s5 + $0x58] sm:$0xff]
  %v726 = vld [vmem:[%s5 + $0x60] sm:$0xff]
  %v727 = vld [vmem:[%s5 + $0x68] sm:$0xff]
  %v728 = vld [vmem:[%s5 + $0x70] sm:$0xff]
  %v729 = vld [vmem:[%s5 + $0x78] sm:$0xff]
  %v730 = vld [vmem:[%s6] sm:$0x3]
  %v732 = vlaneseq
  %v733 = vshrl.u32 %v732, 7
  %v734 = vsub.s32 0, %v733
  %v735 = vrot.slane %v730, %v734
  %v736 = vlaneseq
  %v737 = vshrl.u32 %v736, 7
  %v738 = vsub.s32 1, %v737
  %v739 = vrot.slane %v730, %v738
  %v758 = vunpack.c.l.b16 %v714
  %v759 = vunpack.c.h.b16 %v714
  %v760 = vunpack.c.l.b16 %v715
  %v761 = vunpack.c.h.b16 %v715
  %v762 = vunpack.c.l.b16 %v716
  %v763 = vunpack.c.h.b16 %v716
  %v764 = vunpack.c.l.b16 %v717
  %v765 = vunpack.c.h.b16 %v717
  %v766 = vunpack.c.l.b16 %v718
  %v767 = vunpack.c.h.b16 %v718
  %v768 = vunpack.c.l.b16 %v719
  %v769 = vunpack.c.h.b16 %v719
  %v770 = vunpack.c.l.b16 %v720
  %v771 = vunpack.c.h.b16 %v720
  %v772 = vunpack.c.l.b16 %v721
  %v773 = vunpack.c.h.b16 %v721
  %v774 = vunpack.c.l.b16 %v722
  %v775 = vunpack.c.h.b16 %v722
  %v776 = vunpack.c.l.b16 %v723
  %v777 = vunpack.c.h.b16 %v723
  %v778 = vunpack.c.l.b16 %v724
  %v779 = vunpack.c.h.b16 %v724
  %v780 = vunpack.c.l.b16 %v725
  %v781 = vunpack.c.h.b16 %v725
  %v782 = vunpack.c.l.b16 %v726
  %v783 = vunpack.c.h.b16 %v726
  %v784 = vunpack.c.l.b16 %v727
  %v785 = vunpack.c.h.b16 %v727
  %v786 = vunpack.c.l.b16 %v728
  %v787 = vunpack.c.h.b16 %v728
  %v788 = vunpack.c.l.b16 %v729
  %v789 = vunpack.c.h.b16 %v729
  %v790 = vpack.c.b16 %v760, %v758
  %v791 = vpack.c.b16 %v761, %v759
  %v792 = vpack.c.b16 %v764, %v762
  %v793 = vpack.c.b16 %v765, %v763
  %v794 = vpack.c.b16 %v768, %v766
  %v795 = vpack.c.b16 %v769, %v767
  %v796 = vpack.c.b16 %v772, %v770
  %v797 = vpack.c.b16 %v773, %v771
  %v798 = vpack.c.b16 %v776, %v774
  %v799 = vpack.c.b16 %v777, %v775
  %v800 = vpack.c.b16 %v780, %v778
  %v801 = vpack.c.b16 %v781, %v779
  %v802 = vpack.c.b16 %v784, %v782
  %v803 = vpack.c.b16 %v785, %v783
  %v804 = vpack.c.b16 %v788, %v786
  %v805 = vpack.c.b16 %v789, %v787
  %822 = vmatprep.subr.bf16.mxu0 %v791
  %823 = vmatpush1.bf16.msra.mxu0 %v790
  %824 = vmatprep.subr.bf16.mxu0 %v793
  %825 = vmatpush1.bf16.msra.mxu0 %v792
  %826 = vmatprep.subr.bf16.mxu0 %v795
  %827 = vmatpush1.bf16.msra.mxu0 %v794
  %828 = vmatprep.subr.bf16.mxu0 %v797
  %829 = vmatpush1.bf16.msra.mxu0 %v796
  %830 = vmatprep.subr.bf16.mxu0 %v799
  %831 = vmatpush1.bf16.msra.mxu0 %v798
  %832 = vmatprep.subr.bf16.mxu0 %v801
  %833 = vmatpush1.bf16.msra.mxu0 %v800
  %834 = vmatprep.subr.bf16.mxu0 %v803
  %835 = vmatpush1.bf16.msra.mxu0 %v802
  %836 = vmatprep.subr.bf16.mxu0 %v805
  %837 = vmatpush1.bf16.msra.mxu0 %v804
  %838 = vmatprep.subr.bf16.mxu0 0
  %839 = vmatpush1.bf16.msra.mxu0 0
  %840 = vmatprep.subr.bf16.mxu0 0
  %841 = vmatpush1.bf16.msra.mxu0 0
  %842 = vmatprep.subr.bf16.mxu0 0
  %843 = vmatpush1.bf16.msra.mxu0 0
  %844 = vmatprep.subr.bf16.mxu0 0
  %845 = vmatpush1.bf16.msra.mxu0 0
  %846 = vmatprep.subr.bf16.mxu0 0
  %847 = vmatpush1.bf16.msra.mxu0 0
  %848 = vmatprep.subr.bf16.mxu0 0
  %849 = vmatpush1.bf16.msra.mxu0 0
  %850 = vmatprep.subr.bf16.mxu0 0
  %851 = vmatpush1.bf16.msra.mxu0 0
  %852 = vmatprep.subr.bf16.mxu0 0
  %853 = vmatpush1.bf16.msra.mxu0 0
  %854 = vmatprep.mubr.bf16.mxu0 0
  %855 = vmatmul.mubr.bf16.gmra.mrb[0].mxu0 %v712
  %v856 = vpop.f32.mrb[0].mxu0
  %v857 = vadd.f32 %v735, %v856
  %v858 = vpop.f32.mrb[0].mxu0
  %v859 = vadd.f32 %v739, %v858
  %v860 = vpop.f32.mrb[0].mxu0
  %v861 = vadd.f32 %v735, %v860
  %v862 = vpop.f32.mrb[0].mxu0
  %v863 = vadd.f32 %v739, %v862
  %864 = vmatprep.mubr.bf16.mxu0 0
  %865 = vmatmul.mubr.bf16.gmra.mrb[0].mxu0 %v713
  %v866 = vpop.f32.mrb[0].mxu0
  %v867 = vadd.f32 %v735, %v866
  %v868 = vpop.f32.mrb[0].mxu0
  %v869 = vadd.f32 %v739, %v868
  %v870 = vpop.f32.mrb[0].mxu0
  %v871 = vadd.f32 %v735, %v870
  %v872 = vpop.f32.mrb[0].mxu0
  %v873 = vadd.f32 %v739, %v872
  %874 = vdwg.mxu0
  %v875 = vmax.f32 %v857, 0.0
  %v876 = vmax.f32 %v859, 0.0
  %v877 = vmax.f32 %v861, 0.0
  %v878 = vmax.f32 %v863, 0.0
  %v879 = vmax.f32 %v867, 0.0
  %v880 = vmax.f32 %v869, 0.0
  %v881 = vmax.f32 %v871, 0.0
  %v882 = vmax.f32 %v873, 0.0
  %883 = vst [vmem:[%s14] sm:$0xff] %v875
  %884 = vst [vmem:[%s14 + $0x8] sm:$0xff] %v876
  %885 = vst [vmem:[%s14 + $0x10] sm:$0xff] %v877
  %886 = vst [vmem:[%s14 + $0x18] sm:$0xff] %v878
  %887 = vst [vmem:[%s14 + $0x20] sm:$0xff] %v879
  %888 = vst [vmem:[%s14 + $0x28] sm:$0xff] %v880
  %889 = vst [vmem:[%s14 + $0x30] sm:$0xff] %v881
  %890 = vst [vmem:[%s14 + $0x38] sm:$0xff] %v882
  %v891 = vld [vmem:[%s9] sm:$0xf]
  %v892 = vld [vmem:[%s9 + $0x4] sm:$0xf]
  %v893 = vld [vmem:[%s9 + $0x8] sm:$0xf]
  %v894 = vld [vmem:[%s9 + $0xc] sm:$0xf]
  %v895 = vld [vmem:[%s9 + $0x10] sm:$0xf]
  %v896 = vld [vmem:[%s9 + $0x14] sm:$0xf]
  %v903 = vunpack.c.l.b16 %v891
  %v904 = vunpack.c.l.b16 %v892
  %v905 = vunpack.c.l.b16 %v893
  %v906 = vunpack.c.l.b16 %v894
  %v907 = vunpack.c.l.b16 %v895
  %v908 = vunpack.c.l.b16 %v896
  %v909 = vpack.c.b16 %v904, %v903
  %v910 = vpack.c.b16 %v906, %v905
  %v911 = vpack.c.b16 %v908, %v907
  %vm912 = vcmask 261120
  %v914 = vsel %vm912, %v909, 0
  %v917 = vsel %vm912, %v910, 0
  %v920 = vsel %vm912, %v911, 0
  %922 = vmatprep.subr.bf16.mxu0 0
  %923 = vmatpush1.bf16.msra.mxu0 %v712
  %924 = vmatprep.subr.bf16.mxu0 0
  %925 = vmatpush1.bf16.msra.mxu0 %v713
  %926 = vmatprep.subr.bf16.mxu0 0
  %927 = vmatpush1.bf16.msra.mxu0 0
  %928 = vmatprep.subr.bf16.mxu0 0
  %929 = vmatpush1.bf16.msra.mxu0 0
  %930 = vmatprep.subr.bf16.mxu0 0
  %931 = vmatpush1.bf16.msra.mxu0 0
  %932 = vmatprep.subr.bf16.mxu0 0
  %933 = vmatpush1.bf16.msra.mxu0 0
  %934 = vmatprep.subr.bf16.mxu0 0
  %935 = vmatpush1.bf16.msra.mxu0 0
  %936 = vmatprep.subr.bf16.mxu0 0
  %937 = vmatpush1.bf16.msra.mxu0 0
  %938 = vmatprep.subr.bf16.mxu0 0
  %939 = vmatpush1.bf16.msra.mxu0 0
  %940 = vmatprep.subr.bf16.mxu0 0
  %941 = vmatpush1.bf16.msra.mxu0 0
  %942 = vmatprep.subr.bf16.mxu0 0
  %943 = vmatpush1.bf16.msra.mxu0 0
  %944 = vmatprep.subr.bf16.mxu0 0
  %945 = vmatpush1.bf16.msra.mxu0 0
  %946 = vmatprep.subr.bf16.mxu0 0
  %947 = vmatpush1.bf16.msra.mxu0 0
  %948 = vmatprep.subr.bf16.mxu0 0
  %949 = vmatpush1.bf16.msra.mxu0 0
  %950 = vmatprep.subr.bf16.mxu0 0
  %951 = vmatpush1.bf16.msra.mxu0 0
  %952 = vmatprep.subr.bf16.mxu0 0
  %953 = vmatpush1.bf16.msra.mxu0 0
  %954 = vmatprep.mubr.bf16.mxu0 0
  %955 = vmatmul.mubr.bf16.gmra.mrb[0].mxu0 %v914
  %v956 = vpop.f32.mrb[0].mxu0
  %v957 = vadd.f32 0.0, %v956
  %v958 = vpop.f32.mrb[0].mxu0
  %v959 = vpop.f32.mrb[0].mxu0
  %v960 = vadd.f32 0.0, %v959
  %v961 = vpop.f32.mrb[0].mxu0
  %962 = vmatprep.mubr.bf16.mxu0 0
  %963 = vmatmul.mubr.bf16.gmra.mrb[0].mxu0 %v917
  %v964 = vpop.f32.mrb[0].mxu0
  %v965 = vadd.f32 0.0, %v964
  %v966 = vpop.f32.mrb[0].mxu0
  %v967 = vpop.f32.mrb[0].mxu0
  %v968 = vadd.f32 0.0, %v967
  %v969 = vpop.f32.mrb[0].mxu0
  %970 = vmatprep.mubr.bf16.mxu0 0
  %971 = vmatmul.mubr.bf16.gmra.mrb[0].mxu0 %v920
  %v972 = vpop.f32.mrb[0].mxu0
  %v973 = vadd.f32 0.0, %v972
  %v974 = vpop.f32.mrb[0].mxu0
  %v975 = vpop.f32.mrb[0].mxu0
  %v976 = vadd.f32 0.0, %v975
  %v977 = vpop.f32.mrb[0].mxu0
  %978 = vdwg.mxu0
  %v979 = vpack.c.bf16 %v960, %v957
  %v980 = vpack.c.bf16 %v968, %v965
  %v981 = vpack.c.bf16 %v976, %v973
  %v982 = vld [vmem:[%s7] sm:$0xf]
  %v983 = vld [vmem:[%s7 + $0x4] sm:$0xf]
  %v984 = vld [vmem:[%s7 + $0x8] sm:$0xf]
  %v985 = vld [vmem:[%s7 + $0xc] sm:$0xf]
  %v986 = vld [vmem:[%s7 + $0x10] sm:$0xf]
  %v987 = vld [vmem:[%s7 + $0x14] sm:$0xf]
  %v988 = vld [vmem:[%s7 + $0x18] sm:$0xf]
  %v989 = vld [vmem:[%s7 + $0x1c] sm:$0xf]
  %v990 = vld [vmem:[%s7 + $0x20] sm:$0xf]
  %v991 = vld [vmem:[%s7 + $0x24] sm:$0xf]
  %v992 = vld [vmem:[%s7 + $0x28] sm:$0xf]
  %v993 = vld [vmem:[%s7 + $0x2c] sm:$0xf]
  %v994 = vld [vmem:[%s7 + $0x30] sm:$0xf]
  %v995 = vld [vmem:[%s7 + $0x34] sm:$0xf]
  %v996 = vld [vmem:[%s7 + $0x38] sm:$0xf]
  %v997 = vld [vmem:[%s7 + $0x3c] sm:$0xf]
  %v998 = vld [vmem:[%s7 + $0x40] sm:$0xf]
  %v999 = vld [vmem:[%s7 + $0x44] sm:$0xf]
  %v1000 = vld [vmem:[%s7 + $0x48] sm:$0xf]
  %v1001 = vld [vmem:[%s7 + $0x4c] sm:$0xf]
  %v1002 = vld [vmem:[%s7 + $0x50] sm:$0xf]
  %v1003 = vld [vmem:[%s7 + $0x54] sm:$0xf]
  %v1004 = vld [vmem:[%s7 + $0x58] sm:$0xf]
  %v1005 = vld [vmem:[%s7 + $0x5c] sm:$0xf]
  %v1006 = vld [vmem:[%s7 + $0x60] sm:$0xf]
  %v1007 = vld [vmem:[%s7 + $0x64] sm:$0xf]
  %v1008 = vld [vmem:[%s7 + $0x68] sm:$0xf]
  %v1009 = vld [vmem:[%s7 + $0x6c] sm:$0xf]
  %v1010 = vld [vmem:[%s7 + $0x70] sm:$0xf]
  %v1011 = vld [vmem:[%s7 + $0x74] sm:$0xf]
  %v1012 = vld [vmem:[%s7 + $0x78] sm:$0xf]
  %v1013 = vld [vmem:[%s7 + $0x7c] sm:$0xf]
  %v1014 = vld [vmem:[%s7 + $0x80] sm:$0xf]
  %v1015 = vld [vmem:[%s7 + $0x84] sm:$0xf]
  %v1016 = vld [vmem:[%s7 + $0x88] sm:$0xf]
  %v1017 = vld [vmem:[%s7 + $0x8c] sm:$0xf]
  %v1018 = vld [vmem:[%s7 + $0x90] sm:$0xf]
  %v1019 = vld [vmem:[%s7 + $0x94] sm:$0xf]
  %v1020 = vld [vmem:[%s7 + $0x98] sm:$0xf]
  %v1021 = vld [vmem:[%s7 + $0x9c] sm:$0xf]
  %v1022 = vld [vmem:[%s7 + $0xa0] sm:$0xf]
  %v1023 = vld [vmem:[%s7 + $0xa4] sm:$0xf]
  %v1024 = vld [vmem:[%s7 + $0xa8] sm:$0xf]
  %v1025 = vld [vmem:[%s7 + $0xac] sm:$0xf]
  %v1026 = vld [vmem:[%s7 + $0xb0] sm:$0xf]
  %v1027 = vld [vmem:[%s7 + $0xb4] sm:$0xf]
  %v1028 = vld [vmem:[%s7 + $0xb8] sm:$0xf]
  %v1029 = vld [vmem:[%s7 + $0xbc] sm:$0xf]
  %v1030 = vld [vmem:[%s8] sm:$0x1]
  %v1032 = vlaneseq
  %v1033 = vshrl.u32 %v1032, 7
  %v1034 = vsub.s32 0, %v1033
  %v1035 = vrot.slane %v1030, %v1034
  %v1085 = vunpack.c.l.b16 %v982
  %v1086 = vunpack.c.l.b16 %v983
  %v1087 = vunpack.c.l.b16 %v984
  %v1088 = vunpack.c.l.b16 %v985
  %v1089 = vunpack.c.l.b16 %v986
  %v1090 = vunpack.c.l.b16 %v987
  %v1091 = vunpack.c.l.b16 %v988
  %v1092 = vunpack.c.l.b16 %v989
  %v1093 = vunpack.c.l.b16 %v990
  %v1094 = vunpack.c.l.b16 %v991
  %v1095 = vunpack.c.l.b16 %v992
  %v1096 = vunpack.c.l.b16 %v993
  %v1097 = vunpack.c.l.b16 %v994
  %v1098 = vunpack.c.l.b16 %v995
  %v1099 = vunpack.c.l.b16 %v996
  %v1100 = vunpack.c.l.b16 %v997
  %v1101 = vunpack.c.l.b16 %v998
  %v1102 = vunpack.c.l.b16 %v999
  %v1103 = vunpack.c.l.b16 %v1000
  %v1104 = vunpack.c.l.b16 %v1001
  %v1105 = vunpack.c.l.b16 %v1002
  %v1106 = vunpack.c.l.b16 %v1003
  %v1107 = vunpack.c.l.b16 %v1004
  %v1108 = vunpack.c.l.b16 %v1005
  %v1109 = vunpack.c.l.b16 %v1006
  %v1110 = vunpack.c.l.b16 %v1007
  %v1111 = vunpack.c.l.b16 %v1008
  %v1112 = vunpack.c.l.b16 %v1009
  %v1113 = vunpack.c.l.b16 %v1010
  %v1114 = vunpack.c.l.b16 %v1011
  %v1115 = vunpack.c.l.b16 %v1012
  %v1116 = vunpack.c.l.b16 %v1013
  %v1117 = vunpack.c.l.b16 %v1014
  %v1118 = vunpack.c.l.b16 %v1015
  %v1119 = vunpack.c.l.b16 %v1016
  %v1120 = vunpack.c.l.b16 %v1017
  %v1121 = vunpack.c.l.b16 %v1018
  %v1122 = vunpack.c.l.b16 %v1019
  %v1123 = vunpack.c.l.b16 %v1020
  %v1124 = vunpack.c.l.b16 %v1021
  %v1125 = vunpack.c.l.b16 %v1022
  %v1126 = vunpack.c.l.b16 %v1023
  %v1127 = vunpack.c.l.b16 %v1024
  %v1128 = vunpack.c.l.b16 %v1025
  %v1129 = vunpack.c.l.b16 %v1026
  %v1130 = vunpack.c.l.b16 %v1027
  %v1131 = vunpack.c.l.b16 %v1028
  %v1132 = vunpack.c.l.b16 %v1029
  %v1133 = vpack.c.b16 %v1086, %v1085
  %v1134 = vpack.c.b16 %v1088, %v1087
  %v1135 = vpack.c.b16 %v1090, %v1089
  %v1136 = vpack.c.b16 %v1092, %v1091
  %v1137 = vpack.c.b16 %v1094, %v1093
  %v1138 = vpack.c.b16 %v1096, %v1095
  %v1139 = vpack.c.b16 %v1098, %v1097
  %v1140 = vpack.c.b16 %v1100, %v1099
  %v1141 = vpack.c.b16 %v1102, %v1101
  %v1142 = vpack.c.b16 %v1104, %v1103
  %v1143 = vpack.c.b16 %v1106, %v1105
  %v1144 = vpack.c.b16 %v1108, %v1107
  %v1145 = vpack.c.b16 %v1110, %v1109
  %v1146 = vpack.c.b16 %v1112, %v1111
  %v1147 = vpack.c.b16 %v1114, %v1113
  %v1148 = vpack.c.b16 %v1116, %v1115
  %v1149 = vpack.c.b16 %v1118, %v1117
  %v1150 = vpack.c.b16 %v1120, %v1119
  %v1151 = vpack.c.b16 %v1122, %v1121
  %v1152 = vpack.c.b16 %v1124, %v1123
  %v1153 = vpack.c.b16 %v1126, %v1125
  %v1154 = vpack.c.b16 %v1128, %v1127
  %v1155 = vpack.c.b16 %v1130, %v1129
  %v1156 = vpack.c.b16 %v1132, %v1131
  %1181 = vmatprep.subr.bf16.mxu0 0
  %1182 = vmatpush1.bf16.msra.mxu0 %v1133
  %1183 = vmatprep.subr.bf16.mxu0 0
  %1184 = vmatpush1.bf16.msra.mxu0 %v1134
  %1185 = vmatprep.subr.bf16.mxu0 0
  %1186 = vmatpush1.bf16.msra.mxu0 %v1135
  %1187 = vmatprep.subr.bf16.mxu0 0
  %1188 = vmatpush1.bf16.msra.mxu0 %v1136
  %1189 = vmatprep.subr.bf16.mxu0 0
  %1190 = vmatpush1.bf16.msra.mxu0 %v1137
  %1191 = vmatprep.subr.bf16.mxu0 0
  %1192 = vmatpush1.bf16.msra.mxu0 %v1138
  %1193 = vmatprep.subr.bf16.mxu0 0
  %1194 = vmatpush1.bf16.msra.mxu0 %v1139
  %1195 = vmatprep.subr.bf16.mxu0 0
  %1196 = vmatpush1.bf16.msra.mxu0 %v1140
  %1197 = vmatprep.subr.bf16.mxu0 0
  %1198 = vmatpush1.bf16.msra.mxu0 %v1141
  %1199 = vmatprep.subr.bf16.mxu0 0
  %1200 = vmatpush1.bf16.msra.mxu0 %v1142
  %1201 = vmatprep.subr.bf16.mxu0 0
  %1202 = vmatpush1.bf16.msra.mxu0 %v1143
  %1203 = vmatprep.subr.bf16.mxu0 0
  %1204 = vmatpush1.bf16.msra.mxu0 %v1144
  %1205 = vmatprep.subr.bf16.mxu0 0
  %1206 = vmatpush1.bf16.msra.mxu0 %v1145
  %1207 = vmatprep.subr.bf16.mxu0 0
  %1208 = vmatpush1.bf16.msra.mxu0 %v1146
  %1209 = vmatprep.subr.bf16.mxu0 0
  %1210 = vmatpush1.bf16.msra.mxu0 %v1147
  %1211 = vmatprep.subr.bf16.mxu0 0
  %1212 = vmatpush1.bf16.msra.mxu0 %v1148
  %1213 = vmatprep.mubr.bf16.mxu0 %v980
  %1214 = vmatmul.mubr.bf16.gmra.mrb[0].mxu0 %v979
  %v1215 = vpop.f32.mrb[0].mxu0
  %v1216 = vadd.f32 %v1035, %v1215
  %v1217 = vpop.f32.mrb[0].mxu0
  %v1218 = vpop.f32.mrb[0].mxu0
  %v1219 = vadd.f32 %v1035, %v1218
  %v1220 = vpop.f32.mrb[0].mxu0
  %1221 = vdwg.mxu0
  %1222 = vmatprep.subr.bf16.mxu0 0
  %1223 = vmatpush1.bf16.msra.mxu0 %v1149
  %1224 = vmatprep.subr.bf16.mxu0 0
  %1225 = vmatpush1.bf16.msra.mxu0 %v1150
  %1226 = vmatprep.subr.bf16.mxu0 0
  %1227 = vmatpush1.bf16.msra.mxu0 %v1151
  %1228 = vmatprep.subr.bf16.mxu0 0
  %1229 = vmatpush1.bf16.msra.mxu0 %v1152
  %1230 = vmatprep.subr.bf16.mxu0 0
  %1231 = vmatpush1.bf16.msra.mxu0 %v1153
  %1232 = vmatprep.subr.bf16.mxu0 0
  %1233 = vmatpush1.bf16.msra.mxu0 %v1154
  %1234 = vmatprep.subr.bf16.mxu0 0
  %1235 = vmatpush1.bf16.msra.mxu0 %v1155
  %1236 = vmatprep.subr.bf16.mxu0 0
  %1237 = vmatpush1.bf16.msra.mxu0 %v1156
  %1238 = vmatprep.subr.bf16.mxu0 0
  %1239 = vmatpush1.bf16.msra.mxu0 0
  %1240 = vmatprep.subr.bf16.mxu0 0
  %1241 = vmatpush1.bf16.msra.mxu0 0
  %1242 = vmatprep.subr.bf16.mxu0 0
  %1243 = vmatpush1.bf16.msra.mxu0 0
  %1244 = vmatprep.subr.bf16.mxu0 0
  %1245 = vmatpush1.bf16.msra.mxu0 0
  %1246 = vmatprep.subr.bf16.mxu0 0
  %1247 = vmatpush1.bf16.msra.mxu0 0
  %1248 = vmatprep.subr.bf16.mxu0 0
  %1249 = vmatpush1.bf16.msra.mxu0 0
  %1250 = vmatprep.subr.bf16.mxu0 0
  %1251 = vmatpush1.bf16.msra.mxu0 0
  %1252 = vmatprep.subr.bf16.mxu0 0
  %1253 = vmatpush1.bf16.msra.mxu0 0
  %1254 = vmatprep.mubr.bf16.mxu0 0
  %1255 = vmatmul.mubr.bf16.gmra.mrb[0].mxu0 %v981
  %v1256 = vpop.f32.mrb[0].mxu0
  %v1257 = vadd.f32 %v1216, %v1256
  %v1258 = vpop.f32.mrb[0].mxu0
  %v1259 = vpop.f32.mrb[0].mxu0
  %v1260 = vadd.f32 %v1219, %v1259
  %v1261 = vpop.f32.mrb[0].mxu0
  %1262 = vdwg.mxu0
  %v1263 = vmax.f32 %v1257, 0.0
  %v1264 = vmax.f32 %v1260, 0.0
  %1265 = vst [vmem:[#allocation4] sm:$0xff] 0.0
  %1266 = vst [vmem:[#allocation4 + $0x8] sm:$0x3] 0.0
  %1267 = vst [vmem:[#allocation4 + $0x10] sm:$0xff] 0.0
  %1268 = vst [vmem:[#allocation4 + $0x18] sm:$0x3] 0.0
  %1269 = vst [vmem:[#allocation4 + $0x1] sm:$0xff] %v1263
  %1270 = vst [vmem:[#allocation4 + $0x11] sm:$0xff] %v1264
  %v1271 = vld [vmem:[#allocation4] sm:$0xff]
  %v1272 = vld [vmem:[#allocation4 + $0x10] sm:$0xff]
  %v1273 = vld [vmem:[#allocation4 + $0x1] sm:$0xff]
  %v1274 = vld [vmem:[#allocation4 + $0x11] sm:$0xff]
  %v1275 = vld [vmem:[#allocation4 + $0x2] sm:$0xff]
  %v1276 = vld [vmem:[#allocation4 + $0x12] sm:$0xff]
  %v1277 = vpack.c.bf16 %v1272, %v1271
  %v1278 = vpack.c.bf16 %v1274, %v1273
  %v1279 = vpack.c.bf16 %v1276, %v1275
  %v1280 = vld [vmem:[%s10] sm:$0xf]
  %v1281 = vld [vmem:[%s10 + $0x4] sm:$0xf]
  %v1282 = vld [vmem:[%s10 + $0x8] sm:$0xf]
  %v1283 = vld [vmem:[%s10 + $0xc] sm:$0xf]
  %v1284 = vld [vmem:[%s10 + $0x10] sm:$0xf]
  %v1285 = vld [vmem:[%s10 + $0x14] sm:$0xf]
  %v1286 = vld [vmem:[%s10 + $0x18] sm:$0xf]
  %v1287 = vld [vmem:[%s10 + $0x1c] sm:$0xf]
  %v1288 = vld [vmem:[%s10 + $0x20] sm:$0xf]
  %v1289 = vld [vmem:[%s10 + $0x24] sm:$0xf]
  %v1290 = vld [vmem:[%s10 + $0x28] sm:$0xf]
  %v1291 = vld [vmem:[%s10 + $0x2c] sm:$0xf]
  %v1292 = vld [vmem:[%s10 + $0x30] sm:$0xf]
  %v1293 = vld [vmem:[%s10 + $0x34] sm:$0xf]
  %v1294 = vld [vmem:[%s10 + $0x38] sm:$0xf]
  %v1295 = vld [vmem:[%s10 + $0x3c] sm:$0xf]
  %v1296 = vld [vmem:[%s10 + $0x40] sm:$0xf]
  %v1297 = vld [vmem:[%s10 + $0x44] sm:$0xf]
  %v1298 = vld [vmem:[%s10 + $0x48] sm:$0xf]
  %v1299 = vld [vmem:[%s10 + $0x4c] sm:$0xf]
  %v1300 = vld [vmem:[%s10 + $0x50] sm:$0xf]
  %v1301 = vld [vmem:[%s10 + $0x54] sm:$0xf]
  %v1302 = vld [vmem:[%s10 + $0x58] sm:$0xf]
  %v1303 = vld [vmem:[%s10 + $0x5c] sm:$0xf]
  %v1304 = vld [vmem:[%s10 + $0x60] sm:$0xf]
  %v1305 = vld [vmem:[%s10 + $0x64] sm:$0xf]
  %v1306 = vld [vmem:[%s10 + $0x68] sm:$0xf]
  %v1307 = vld [vmem:[%s10 + $0x6c] sm:$0xf]
  %v1308 = vld [vmem:[%s10 + $0x70] sm:$0xf]
  %v1309 = vld [vmem:[%s10 + $0x74] sm:$0xf]
  %v1310 = vld [vmem:[%s10 + $0x78] sm:$0xf]
  %v1311 = vld [vmem:[%s10 + $0x7c] sm:$0xf]
  %v1312 = vld [vmem:[%s10 + $0x80] sm:$0xf]
  %v1313 = vld [vmem:[%s10 + $0x84] sm:$0xf]
  %v1314 = vld [vmem:[%s10 + $0x88] sm:$0xf]
  %v1315 = vld [vmem:[%s10 + $0x8c] sm:$0xf]
  %v1316 = vld [vmem:[%s10 + $0x90] sm:$0xf]
  %v1317 = vld [vmem:[%s10 + $0x94] sm:$0xf]
  %v1318 = vld [vmem:[%s10 + $0x98] sm:$0xf]
  %v1319 = vld [vmem:[%s10 + $0x9c] sm:$0xf]
  %v1320 = vld [vmem:[%s10 + $0xa0] sm:$0xf]
  %v1321 = vld [vmem:[%s10 + $0xa4] sm:$0xf]
  %v1322 = vld [vmem:[%s10 + $0xa8] sm:$0xf]
  %v1323 = vld [vmem:[%s10 + $0xac] sm:$0xf]
  %v1324 = vld [vmem:[%s10 + $0xb0] sm:$0xf]
  %v1325 = vld [vmem:[%s10 + $0xb4] sm:$0xf]
  %v1326 = vld [vmem:[%s10 + $0xb8] sm:$0xf]
  %v1327 = vld [vmem:[%s10 + $0xbc] sm:$0xf]
  %v1328 = vld [vmem:[%s11] sm:$0x1]
  %v1330 = vlaneseq
  %v1331 = vshrl.u32 %v1330, 7
  %v1332 = vsub.s32 0, %v1331
  %v1333 = vrot.slane %v1328, %v1332
  %v1383 = vunpack.c.l.b16 %v1280
  %v1384 = vunpack.c.l.b16 %v1281
  %v1385 = vunpack.c.l.b16 %v1282
  %v1386 = vunpack.c.l.b16 %v1283
  %v1387 = vunpack.c.l.b16 %v1284
  %v1388 = vunpack.c.l.b16 %v1285
  %v1389 = vunpack.c.l.b16 %v1286
  %v1390 = vunpack.c.l.b16 %v1287
  %v1391 = vunpack.c.l.b16 %v1288
  %v1392 = vunpack.c.l.b16 %v1289
  %v1393 = vunpack.c.l.b16 %v1290
  %v1394 = vunpack.c.l.b16 %v1291
  %v1395 = vunpack.c.l.b16 %v1292
  %v1396 = vunpack.c.l.b16 %v1293
  %v1397 = vunpack.c.l.b16 %v1294
  %v1398 = vunpack.c.l.b16 %v1295
  %v1399 = vunpack.c.l.b16 %v1296
  %v1400 = vunpack.c.l.b16 %v1297
  %v1401 = vunpack.c.l.b16 %v1298
  %v1402 = vunpack.c.l.b16 %v1299
  %v1403 = vunpack.c.l.b16 %v1300
  %v1404 = vunpack.c.l.b16 %v1301
  %v1405 = vunpack.c.l.b16 %v1302
  %v1406 = vunpack.c.l.b16 %v1303
  %v1407 = vunpack.c.l.b16 %v1304
  %v1408 = vunpack.c.l.b16 %v1305
  %v1409 = vunpack.c.l.b16 %v1306
  %v1410 = vunpack.c.l.b16 %v1307
  %v1411 = vunpack.c.l.b16 %v1308
  %v1412 = vunpack.c.l.b16 %v1309
  %v1413 = vunpack.c.l.b16 %v1310
  %v1414 = vunpack.c.l.b16 %v1311
  %v1415 = vunpack.c.l.b16 %v1312
  %v1416 = vunpack.c.l.b16 %v1313
  %v1417 = vunpack.c.l.b16 %v1314
  %v1418 = vunpack.c.l.b16 %v1315
  %v1419 = vunpack.c.l.b16 %v1316
  %v1420 = vunpack.c.l.b16 %v1317
  %v1421 = vunpack.c.l.b16 %v1318
  %v1422 = vunpack.c.l.b16 %v1319
  %v1423 = vunpack.c.l.b16 %v1320
  %v1424 = vunpack.c.l.b16 %v1321
  %v1425 = vunpack.c.l.b16 %v1322
  %v1426 = vunpack.c.l.b16 %v1323
  %v1427 = vunpack.c.l.b16 %v1324
  %v1428 = vunpack.c.l.b16 %v1325
  %v1429 = vunpack.c.l.b16 %v1326
  %v1430 = vunpack.c.l.b16 %v1327
  %v1431 = vpack.c.b16 %v1384, %v1383
  %v1432 = vpack.c.b16 %v1386, %v1385
  %v1433 = vpack.c.b16 %v1388, %v1387
  %v1434 = vpack.c.b16 %v1390, %v1389
  %v1435 = vpack.c.b16 %v1392, %v1391
  %v1436 = vpack.c.b16 %v1394, %v1393
  %v1437 = vpack.c.b16 %v1396, %v1395
  %v1438 = vpack.c.b16 %v1398, %v1397
  %v1439 = vpack.c.b16 %v1400, %v1399
  %v1440 = vpack.c.b16 %v1402, %v1401
  %v1441 = vpack.c.b16 %v1404, %v1403
  %v1442 = vpack.c.b16 %v1406, %v1405
  %v1443 = vpack.c.b16 %v1408, %v1407
  %v1444 = vpack.c.b16 %v1410, %v1409
  %v1445 = vpack.c.b16 %v1412, %v1411
  %v1446 = vpack.c.b16 %v1414, %v1413
  %v1447 = vpack.c.b16 %v1416, %v1415
  %v1448 = vpack.c.b16 %v1418, %v1417
  %v1449 = vpack.c.b16 %v1420, %v1419
  %v1450 = vpack.c.b16 %v1422, %v1421
  %v1451 = vpack.c.b16 %v1424, %v1423
  %v1452 = vpack.c.b16 %v1426, %v1425
  %v1453 = vpack.c.b16 %v1428, %v1427
  %v1454 = vpack.c.b16 %v1430, %v1429
  %1479 = vmatprep.subr.bf16.mxu0 0
  %1480 = vmatpush1.bf16.msra.mxu0 %v1431
  %1481 = vmatprep.subr.bf16.mxu0 0
  %1482 = vmatpush1.bf16.msra.mxu0 %v1432
  %1483 = vmatprep.subr.bf16.mxu0 0
  %1484 = vmatpush1.bf16.msra.mxu0 %v1433
  %1485 = vmatprep.subr.bf16.mxu0 0
  %1486 = vmatpush1.bf16.msra.mxu0 %v1434
  %1487 = vmatprep.subr.bf16.mxu0 0
  %1488 = vmatpush1.bf16.msra.mxu0 %v1435
  %1489 = vmatprep.subr.bf16.mxu0 0
  %1490 = vmatpush1.bf16.msra.mxu0 %v1436
  %1491 = vmatprep.subr.bf16.mxu0 0
  %1492 = vmatpush1.bf16.msra.mxu0 %v1437
  %1493 = vmatprep.subr.bf16.mxu0 0
  %1494 = vmatpush1.bf16.msra.mxu0 %v1438
  %1495 = vmatprep.subr.bf16.mxu0 0
  %1496 = vmatpush1.bf16.msra.mxu0 %v1439
  %1497 = vmatprep.subr.bf16.mxu0 0
  %1498 = vmatpush1.bf16.msra.mxu0 %v1440
  %1499 = vmatprep.subr.bf16.mxu0 0
  %1500 = vmatpush1.bf16.msra.mxu0 %v1441
  %1501 = vmatprep.subr.bf16.mxu0 0
  %1502 = vmatpush1.bf16.msra.mxu0 %v1442
  %1503 = vmatprep.subr.bf16.mxu0 0
  %1504 = vmatpush1.bf16.msra.mxu0 %v1443
  %1505 = vmatprep.subr.bf16.mxu0 0
  %1506 = vmatpush1.bf16.msra.mxu0 %v1444
  %1507 = vmatprep.subr.bf16.mxu0 0
  %1508 = vmatpush1.bf16.msra.mxu0 %v1445
  %1509 = vmatprep.subr.bf16.mxu0 0
  %1510 = vmatpush1.bf16.msra.mxu0 %v1446
  %1511 = vmatprep.mubr.bf16.mxu0 %v1278
  %1512 = vmatmul.mubr.bf16.gmra.mrb[0].mxu0 %v1277
  %v1513 = vpop.f32.mrb[0].mxu0
  %v1514 = vadd.f32 %v1333, %v1513
  %v1515 = vpop.f32.mrb[0].mxu0
  %v1516 = vpop.f32.mrb[0].mxu0
  %v1517 = vadd.f32 %v1333, %v1516
  %v1518 = vpop.f32.mrb[0].mxu0
  %1519 = vdwg.mxu0
  %1520 = vmatprep.subr.bf16.mxu0 0
  %1521 = vmatpush1.bf16.msra.mxu0 %v1447
  %1522 = vmatprep.subr.bf16.mxu0 0
  %1523 = vmatpush1.bf16.msra.mxu0 %v1448
  %1524 = vmatprep.subr.bf16.mxu0 0
  %1525 = vmatpush1.bf16.msra.mxu0 %v1449
  %1526 = vmatprep.subr.bf16.mxu0 0
  %1527 = vmatpush1.bf16.msra.mxu0 %v1450
  %1528 = vmatprep.subr.bf16.mxu0 0
  %1529 = vmatpush1.bf16.msra.mxu0 %v1451
  %1530 = vmatprep.subr.bf16.mxu0 0
  %1531 = vmatpush1.bf16.msra.mxu0 %v1452
  %1532 = vmatprep.subr.bf16.mxu0 0
  %1533 = vmatpush1.bf16.msra.mxu0 %v1453
  %1534 = vmatprep.subr.bf16.mxu0 0
  %1535 = vmatpush1.bf16.msra.mxu0 %v1454
  %1536 = vmatprep.subr.bf16.mxu0 0
  %1537 = vmatpush1.bf16.msra.mxu0 0
  %1538 = vmatprep.subr.bf16.mxu0 0
  %1539 = vmatpush1.bf16.msra.mxu0 0
  %1540 = vmatprep.subr.bf16.mxu0 0
  %1541 = vmatpush1.bf16.msra.mxu0 0
  %1542 = vmatprep.subr.bf16.mxu0 0
  %1543 = vmatpush1.bf16.msra.mxu0 0
  %1544 = vmatprep.subr.bf16.mxu0 0
  %1545 = vmatpush1.bf16.msra.mxu0 0
  %1546 = vmatprep.subr.bf16.mxu0 0
  %1547 = vmatpush1.bf16.msra.mxu0 0
  %1548 = vmatprep.subr.bf16.mxu0 0
  %1549 = vmatpush1.bf16.msra.mxu0 0
  %1550 = vmatprep.subr.bf16.mxu0 0
  %1551 = vmatpush1.bf16.msra.mxu0 0
  %1552 = vmatprep.mubr.bf16.mxu0 0
  %1553 = vmatmul.mubr.bf16.gmra.mrb[0].mxu0 %v1279
  %v1554 = vpop.f32.mrb[0].mxu0
  %v1555 = vadd.f32 %v1514, %v1554
  %v1556 = vpop.f32.mrb[0].mxu0
  %v1557 = vpop.f32.mrb[0].mxu0
  %v1558 = vadd.f32 %v1517, %v1557
  %v1559 = vpop.f32.mrb[0].mxu0
  %1560 = vdwg.mxu0
  %v1561 = vmax.f32 %v1555, 0.0
  %v1562 = vmax.f32 %v1558, 0.0
  %v1563 = vpack.c.bf16 %v1562, %v1561
  %v1564 = vld [vmem:[%s12] sm:$0xff]
  %v1565 = vld [vmem:[%s12 + $0x8] sm:$0xff]
  %v1566 = vld [vmem:[%s12 + $0x10] sm:$0xff]
  %v1567 = vld [vmem:[%s12 + $0x18] sm:$0xff]
  %v1568 = vld [vmem:[%s12 + $0x20] sm:$0xff]
  %v1569 = vld [vmem:[%s12 + $0x28] sm:$0xff]
  %v1570 = vld [vmem:[%s12 + $0x30] sm:$0xff]
  %v1571 = vld [vmem:[%s12 + $0x38] sm:$0xff]
  %v1572 = vld [vmem:[%s12 + $0x40] sm:$0xff]
  %v1573 = vld [vmem:[%s12 + $0x48] sm:$0xff]
  %v1574 = vld [vmem:[%s12 + $0x50] sm:$0xff]
  %v1575 = vld [vmem:[%s12 + $0x58] sm:$0xff]
  %v1576 = vld [vmem:[%s12 + $0x60] sm:$0xff]
  %v1577 = vld [vmem:[%s12 + $0x68] sm:$0xff]
  %v1578 = vld [vmem:[%s12 + $0x70] sm:$0xff]
  %v1579 = vld [vmem:[%s12 + $0x78] sm:$0xff]
  %v1580 = vld [vmem:[%s12 + $0x80] sm:$0xff]
  %v1581 = vld [vmem:[%s12 + $0x88] sm:$0xff]
  %v1582 = vld [vmem:[%s12 + $0x90] sm:$0xff]
  %v1583 = vld [vmem:[%s12 + $0x98] sm:$0xff]
  %v1584 = vld [vmem:[%s12 + $0xa0] sm:$0xff]
  %v1585 = vld [vmem:[%s12 + $0xa8] sm:$0xff]
  %v1586 = vld [vmem:[%s12 + $0xb0] sm:$0xff]
  %v1587 = vld [vmem:[%s12 + $0xb8] sm:$0xff]
  %v1588 = vld [vmem:[%s12 + $0xc0] sm:$0xff]
  %v1589 = vld [vmem:[%s12 + $0xc8] sm:$0xff]
  %v1590 = vld [vmem:[%s12 + $0xd0] sm:$0xff]
  %v1591 = vld [vmem:[%s12 + $0xd8] sm:$0xff]
  %v1592 = vld [vmem:[%s12 + $0xe0] sm:$0xff]
  %v1593 = vld [vmem:[%s12 + $0xe8] sm:$0xff]
  %v1594 = vld [vmem:[%s12 + $0xf0] sm:$0xff]
  %v1595 = vld [vmem:[%s12 + $0xf8] sm:$0xff]
  %v1596 = vld [vmem:[%s13] sm:$0xf]
  %v1598 = vlaneseq
  %v1599 = vshrl.u32 %v1598, 7
  %v1600 = vsub.s32 0, %v1599
  %v1601 = vrot.slane %v1596, %v1600
  %v1602 = vlaneseq
  %v1603 = vshrl.u32 %v1602, 7
  %v1604 = vsub.s32 1, %v1603
  %v1605 = vrot.slane %v1596, %v1604
  %v1606 = vlaneseq
  %v1607 = vshrl.u32 %v1606, 7
  %v1608 = vsub.s32 2, %v1607
  %v1609 = vrot.slane %v1596, %v1608
  %v1610 = vlaneseq
  %v1611 = vshrl.u32 %v1610, 7
  %v1612 = vsub.s32 3, %v1611
  %v1613 = vrot.slane %v1596, %v1612
  %v1650 = vunpack.c.l.b16 %v1564
  %v1651 = vunpack.c.h.b16 %v1564
  %v1652 = vunpack.c.l.b16 %v1565
  %v1653 = vunpack.c.h.b16 %v1565
  %v1654 = vunpack.c.l.b16 %v1566
  %v1655 = vunpack.c.h.b16 %v1566
  %v1656 = vunpack.c.l.b16 %v1567
  %v1657 = vunpack.c.h.b16 %v1567
  %v1658 = vunpack.c.l.b16 %v1568
  %v1659 = vunpack.c.h.b16 %v1568
  %v1660 = vunpack.c.l.b16 %v1569
  %v1661 = vunpack.c.h.b16 %v1569
  %v1662 = vunpack.c.l.b16 %v1570
  %v1663 = vunpack.c.h.b16 %v1570
  %v1664 = vunpack.c.l.b16 %v1571
  %v1665 = vunpack.c.h.b16 %v1571
  %v1666 = vunpack.c.l.b16 %v1572
  %v1667 = vunpack.c.h.b16 %v1572
  %v1668 = vunpack.c.l.b16 %v1573
  %v1669 = vunpack.c.h.b16 %v1573
  %v1670 = vunpack.c.l.b16 %v1574
  %v1671 = vunpack.c.h.b16 %v1574
  %v1672 = vunpack.c.l.b16 %v1575
  %v1673 = vunpack.c.h.b16 %v1575
  %v1674 = vunpack.c.l.b16 %v1576
  %v1675 = vunpack.c.h.b16 %v1576
  %v1676 = vunpack.c.l.b16 %v1577
  %v1677 = vunpack.c.h.b16 %v1577
  %v1678 = vunpack.c.l.b16 %v1578
  %v1679 = vunpack.c.h.b16 %v1578
  %v1680 = vunpack.c.l.b16 %v1579
  %v1681 = vunpack.c.h.b16 %v1579
  %v1682 = vunpack.c.l.b16 %v1580
  %v1683 = vunpack.c.h.b16 %v1580
  %v1684 = vunpack.c.l.b16 %v1581
  %v1685 = vunpack.c.h.b16 %v1581
  %v1686 = vunpack.c.l.b16 %v1582
  %v1687 = vunpack.c.h.b16 %v1582
  %v1688 = vunpack.c.l.b16 %v1583
  %v1689 = vunpack.c.h.b16 %v1583
  %v1690 = vunpack.c.l.b16 %v1584
  %v1691 = vunpack.c.h.b16 %v1584
  %v1692 = vunpack.c.l.b16 %v1585
  %v1693 = vunpack.c.h.b16 %v1585
  %v1694 = vunpack.c.l.b16 %v1586
  %v1695 = vunpack.c.h.b16 %v1586
  %v1696 = vunpack.c.l.b16 %v1587
  %v1697 = vunpack.c.h.b16 %v1587
  %v1698 = vunpack.c.l.b16 %v1588
  %v1699 = vunpack.c.h.b16 %v1588
  %v1700 = vunpack.c.l.b16 %v1589
  %v1701 = vunpack.c.h.b16 %v1589
  %v1702 = vunpack.c.l.b16 %v1590
  %v1703 = vunpack.c.h.b16 %v1590
  %v1704 = vunpack.c.l.b16 %v1591
  %v1705 = vunpack.c.h.b16 %v1591
  %v1706 = vunpack.c.l.b16 %v1592
  %v1707 = vunpack.c.h.b16 %v1592
  %v1708 = vunpack.c.l.b16 %v1593
  %v1709 = vunpack.c.h.b16 %v1593
  %v1710 = vunpack.c.l.b16 %v1594
  %v1711 = vunpack.c.h.b16 %v1594
  %v1712 = vunpack.c.l.b16 %v1595
  %v1713 = vunpack.c.h.b16 %v1595
  %v1714 = vpack.c.b16 %v1654, %v1650
  %v1715 = vpack.c.b16 %v1655, %v1651
  %v1716 = vpack.c.b16 %v1656, %v1652
  %v1717 = vpack.c.b16 %v1657, %v1653
  %v1718 = vpack.c.b16 %v1662, %v1658
  %v1719 = vpack.c.b16 %v1663, %v1659
  %v1720 = vpack.c.b16 %v1664, %v1660
  %v1721 = vpack.c.b16 %v1665, %v1661
  %v1722 = vpack.c.b16 %v1670, %v1666
  %v1723 = vpack.c.b16 %v1671, %v1667
  %v1724 = vpack.c.b16 %v1672, %v1668
  %v1725 = vpack.c.b16 %v1673, %v1669
  %v1726 = vpack.c.b16 %v1678, %v1674
  %v1727 = vpack.c.b16 %v1679, %v1675
  %v1728 = vpack.c.b16 %v1680, %v1676
  %v1729 = vpack.c.b16 %v1681, %v1677
  %v1730 = vpack.c.b16 %v1686, %v1682
  %v1731 = vpack.c.b16 %v1687, %v1683
  %v1732 = vpack.c.b16 %v1688, %v1684
  %v1733 = vpack.c.b16 %v1689, %v1685
  %v1734 = vpack.c.b16 %v1694, %v1690
  %v1735 = vpack.c.b16 %v1695, %v1691
  %v1736 = vpack.c.b16 %v1696, %v1692
  %v1737 = vpack.c.b16 %v1697, %v1693
  %v1738 = vpack.c.b16 %v1702, %v1698
  %v1739 = vpack.c.b16 %v1703, %v1699
  %v1740 = vpack.c.b16 %v1704, %v1700
  %v1741 = vpack.c.b16 %v1705, %v1701
  %v1742 = vpack.c.b16 %v1710, %v1706
  %v1743 = vpack.c.b16 %v1711, %v1707
  %v1744 = vpack.c.b16 %v1712, %v1708
  %v1745 = vpack.c.b16 %v1713, %v1709
  %1778 = vmatprep.subr.bf16.mxu0 %v1715
  %1779 = vmatpush1.bf16.msra.mxu0 %v1714
  %1780 = vmatprep.subr.bf16.mxu0 %v1719
  %1781 = vmatpush1.bf16.msra.mxu0 %v1718
  %1782 = vmatprep.subr.bf16.mxu0 %v1723
  %1783 = vmatpush1.bf16.msra.mxu0 %v1722
  %1784 = vmatprep.subr.bf16.mxu0 %v1727
  %1785 = vmatpush1.bf16.msra.mxu0 %v1726
  %1786 = vmatprep.subr.bf16.mxu0 %v1731
  %1787 = vmatpush1.bf16.msra.mxu0 %v1730
  %1788 = vmatprep.subr.bf16.mxu0 %v1735
  %1789 = vmatpush1.bf16.msra.mxu0 %v1734
  %1790 = vmatprep.subr.bf16.mxu0 %v1739
  %1791 = vmatpush1.bf16.msra.mxu0 %v1738
  %1792 = vmatprep.subr.bf16.mxu0 %v1743
  %1793 = vmatpush1.bf16.msra.mxu0 %v1742
  %1794 = vmatprep.subr.bf16.mxu0 0
  %1795 = vmatpush1.bf16.msra.mxu0 0
  %1796 = vmatprep.subr.bf16.mxu0 0
  %1797 = vmatpush1.bf16.msra.mxu0 0
  %1798 = vmatprep.subr.bf16.mxu0 0
  %1799 = vmatpush1.bf16.msra.mxu0 0
  %1800 = vmatprep.subr.bf16.mxu0 0
  %1801 = vmatpush1.bf16.msra.mxu0 0
  %1802 = vmatprep.subr.bf16.mxu0 0
  %1803 = vmatpush1.bf16.msra.mxu0 0
  %1804 = vmatprep.subr.bf16.mxu0 0
  %1805 = vmatpush1.bf16.msra.mxu0 0
  %1806 = vmatprep.subr.bf16.mxu0 0
  %1807 = vmatpush1.bf16.msra.mxu0 0
  %1808 = vmatprep.subr.bf16.mxu0 0
  %1809 = vmatpush1.bf16.msra.mxu0 0
  %1810 = vmatprep.mubr.bf16.mxu0 0
  %1811 = vmatmul.mubr.bf16.gmra.mrb[0].mxu0 %v1563
  %v1812 = vpop.f32.mrb[0].mxu0
  %v1813 = vadd.f32 %v1601, %v1812
  %v1814 = vpop.f32.mrb[0].mxu0
  %v1815 = vadd.f32 %v1605, %v1814
  %v1816 = vpop.f32.mrb[0].mxu0
  %v1817 = vadd.f32 %v1601, %v1816
  %v1818 = vpop.f32.mrb[0].mxu0
  %v1819 = vadd.f32 %v1605, %v1818
  %1820 = vdwg.mxu0
  %1821 = vmatprep.subr.bf16.mxu0 %v1717
  %1822 = vmatpush1.bf16.msra.mxu0 %v1716
  %1823 = vmatprep.subr.bf16.mxu0 %v1721
  %1824 = vmatpush1.bf16.msra.mxu0 %v1720
  %1825 = vmatprep.subr.bf16.mxu0 %v1725
  %1826 = vmatpush1.bf16.msra.mxu0 %v1724
  %1827 = vmatprep.subr.bf16.mxu0 %v1729
  %1828 = vmatpush1.bf16.msra.mxu0 %v1728
  %1829 = vmatprep.subr.bf16.mxu0 %v1733
  %1830 = vmatpush1.bf16.msra.mxu0 %v1732
  %1831 = vmatprep.subr.bf16.mxu0 %v1737
  %1832 = vmatpush1.bf16.msra.mxu0 %v1736
  %1833 = vmatprep.subr.bf16.mxu0 %v1741
  %1834 = vmatpush1.bf16.msra.mxu0 %v1740
  %1835 = vmatprep.subr.bf16.mxu0 %v1745
  %1836 = vmatpush1.bf16.msra.mxu0 %v1744
  %1837 = vmatprep.subr.bf16.mxu0 0
  %1838 = vmatpush1.bf16.msra.mxu0 0
  %1839 = vmatprep.subr.bf16.mxu0 0
  %1840 = vmatpush1.bf16.msra.mxu0 0
  %1841 = vmatprep.subr.bf16.mxu0 0
  %1842 = vmatpush1.bf16.msra.mxu0 0
  %1843 = vmatprep.subr.bf16.mxu0 0
  %1844 = vmatpush1.bf16.msra.mxu0 0
  %1845 = vmatprep.subr.bf16.mxu0 0
  %1846 = vmatpush1.bf16.msra.mxu0 0
  %1847 = vmatprep.subr.bf16.mxu0 0
  %1848 = vmatpush1.bf16.msra.mxu0 0
  %1849 = vmatprep.subr.bf16.mxu0 0
  %1850 = vmatpush1.bf16.msra.mxu0 0
  %1851 = vmatprep.subr.bf16.mxu0 0
  %1852 = vmatpush1.bf16.msra.mxu0 0
  %1853 = vmatprep.mubr.bf16.mxu0 0
  %1854 = vmatmul.mubr.bf16.gmra.mrb[0].mxu0 %v1563
  %v1855 = vpop.f32.mrb[0].mxu0
  %v1856 = vadd.f32 %v1609, %v1855
  %v1857 = vpop.f32.mrb[0].mxu0
  %v1858 = vadd.f32 %v1613, %v1857
  %v1859 = vpop.f32.mrb[0].mxu0
  %v1860 = vadd.f32 %v1609, %v1859
  %v1861 = vpop.f32.mrb[0].mxu0
  %v1862 = vadd.f32 %v1613, %v1861
  %1863 = vdwg.mxu0
  %v1864 = vmax.f32 %v1813, 0.0
  %v1865 = vmax.f32 %v1815, 0.0
  %v1866 = vmax.f32 %v1856, 0.0
  %v1867 = vmax.f32 %v1858, 0.0
  %v1868 = vmax.f32 %v1817, 0.0
  %v1869 = vmax.f32 %v1819, 0.0
  %v1870 = vmax.f32 %v1860, 0.0
  %v1871 = vmax.f32 %v1862, 0.0
  %1872 = vst [vmem:[%s15] sm:$0xff] %v1864
  %1873 = vst [vmem:[%s15 + $0x8] sm:$0xff] %v1865
  %1874 = vst [vmem:[%s15 + $0x10] sm:$0xff] %v1866
  %1875 = vst [vmem:[%s15 + $0x18] sm:$0xff] %v1867
  %1876 = vst [vmem:[%s15 + $0x20] sm:$0xff] %v1868
  %1877 = vst [vmem:[%s15 + $0x28] sm:$0xff] %v1869
  %1878 = vst [vmem:[%s15 + $0x30] sm:$0xff] %v1870
  %1879 = vst [vmem:[%s15 + $0x38] sm:$0xff] %v1871
  // Predicated region
  $region58: #{forward.1} parent=0 // pred_check
    _
  $region59: #{forward.1} parent=0 // pred_check_branch
    %1881 = sbr.rel (0) target = $region61
  $region60: #{forward.1} parent=0 // pred_region
    _
  $region61: #{forward.1} parent=0 // pred_fallthru
    _
  // Predicated region
  $region62: #{forward.1} parent=0 // pred_check
    _
  $region63: #{forward.1} parent=0 // pred_check_branch
    %1883 = sbr.rel (0) target = $region65
  $region64: #{forward.1} parent=0 // pred_region
    _
  $region65: #{forward.1} parent=0 // pred_fallthru
    _
  // Predicated region
  $region66: #{forward.1} parent=0 // pred_check
    _
  $region67: #{forward.1} parent=0 // pred_check_branch
    %1885 = sbr.rel (0) target = $region69
  $region68: #{forward.1} parent=0 // pred_region
    _
  $region69: #{forward.1} parent=0 // pred_fallthru
    _
  // Predicated region
  $region70: #{forward.1} parent=0 // pred_check
    _
  $region71: #{forward.1} parent=0 // pred_check_branch
    %1887 = sbr.rel (0) target = $region73
  $region72: #{forward.1} parent=0 // pred_region
    _
  $region73: #{forward.1} parent=0 // pred_fallthru
    _

</llo_original>
